<compile_context>
chip_gen: v7x
topology: tpu7x:2x2x1
jax: 0.10.0
libtpu: 0.0.40
codegen_flags: <defaults>
</compile_context>

<pallas_src>
import functools
import math

import jax
import jax.numpy as jnp
from jax.experimental import pallas as pl
from jax.experimental.pallas import tpu as pltpu


def _ceil_to(x, m):
    return -(-x // m) * m


def _tap_range(tap, in_size, out_size, stride, pad):
    """Static range of output indices whose input index for this tap is in-bounds."""
    lo = max(0, -((tap - pad) // stride))                 # ceil((pad - tap)/stride)
    hi = min(out_size - 1, (in_size - 1 - tap + pad) // stride)
    n = hi - lo + 1
    start = lo * stride + tap - pad
    return lo, n, start


def _maxpool_kernel(x_ref, o_ref, rows_ref, hw_ref, owc_ref, *,
                    ksize, stride, padding, pad_val):
    """MaxPool2d forward on one (TILE_NC, H, W) block, NCHW-native layout.

    x_ref   : (T, H, W)    input block   (lane axis = W)
    o_ref   : (T, Ho, Wo)  output block
    rows_ref: (T, Ho, W)   H-reduced intermediate (native layout)
    hw_ref  : (Ho, W, T)   same data with lane axis = T (per-row 2-D transposes)
    owc_ref : (Ho, Wo, T)  fully pooled, lane axis = T
    """
    T, H, W = x_ref.shape
    _, out_h, out_w = o_ref.shape
    dtype = x_ref.dtype

    # ---- Pass 1: max over the kh taps (stride along H = sublane axis). -----
    # Per-tap valid ranges implement the implicit pad_val padding without a
    # padded copy; only uncovered border rows get filled.
    first = True
    for kh in range(ksize):
        lo, n, start = _tap_range(kh, H, out_h, stride, padding)
        if n <= 0:
            continue
        tap = x_ref[:, pl.ds(start, n, stride), :]
        if first:
            if lo > 0:
                rows_ref[:, 0:lo, :] = jnp.full((T, lo, W), pad_val, dtype)
            if lo + n < out_h:
                rows_ref[:, lo + n:out_h, :] = jnp.full(
                    (T, out_h - lo - n, W), pad_val, dtype)
            rows_ref[:, lo:lo + n, :] = tap
            first = False
        else:
            rows_ref[:, lo:lo + n, :] = jnp.maximum(rows_ref[:, lo:lo + n, :], tap)

    # ---- In-VMEM relayout (T, Ho, W) -> (Ho, W, T): per-row 2-D transposes
    # so the W pooling stride lands on a sublane axis, never the lane axis.
    for oh in range(out_h):
        hw_ref[oh] = rows_ref[:, oh, :].T

    # ---- Pass 2: max over the kw taps (stride along W = sublane of hw_ref).
    first = True
    for kw in range(ksize):
        lo, n, start = _tap_range(kw, W, out_w, stride, padding)
        if n <= 0:
            continue
        tap = hw_ref[:, pl.ds(start, n, stride), :]
        if first:
            if lo > 0:
                owc_ref[:, 0:lo, :] = jnp.full((out_h, lo, T), pad_val, dtype)
            if lo + n < out_w:
                owc_ref[:, lo + n:out_w, :] = jnp.full(
                    (out_h, out_w - lo - n, T), pad_val, dtype)
            owc_ref[:, lo:lo + n, :] = tap
            first = False
        else:
            owc_ref[:, lo:lo + n, :] = jnp.maximum(owc_ref[:, lo:lo + n, :], tap)

    # ---- Relayout back to the NCHW block layout and store. -----------------
    for oh in range(out_h):
        o_ref[:, oh, :] = owc_ref[oh].T


def max_pool2d_pallas(x, kernel_size, stride, padding):
    """x: (N, C, H, W) -> (N, C, Ho, Wo); matches nn.MaxPool2d (floor mode)."""
    N, C, H, W = x.shape
    NC = N * C
    out_h = (H + 2 * padding - kernel_size) // stride + 1
    out_w = (W + 2 * padding - kernel_size) // stride + 1
    dtype = x.dtype
    itemsize = jnp.dtype(dtype).itemsize

    if jnp.issubdtype(dtype, jnp.floating):
        pad_val = -float("inf")
    else:
        pad_val = int(jnp.iinfo(dtype).min)

    # NCHW in, NCHW out -- only free reshapes, no HBM transpose passes.
    x3 = x.reshape(NC, H, W)

    # Per-generation VMEM budget (64 MiB/TC on v7x, 128 MiB on v5e/v6e).
    try:
        vmem_cap = int(pltpu.get_tpu_info().vmem_capacity_bytes)
    except Exception:
        vmem_cap = 64 << 20                      # safe for every generation
    budget = int(vmem_cap * 0.7)

    def padded_elems(shape):
        s = list(shape)
        s[-1] = _ceil_to(s[-1], 128)
        s[-2] = _ceil_to(s[-2], 8)
        return math.prod(s)

    def per_tile_bytes(t):
        blk_in = 2 * padded_elems((t, H, W))             # pipeline double-buffer
        blk_out = 2 * padded_elems((t, out_h, out_w))
        scratch = (padded_elems((t, out_h, W)) +
                   padded_elems((out_h, W, t)) +
                   padded_elems((out_h, out_w, t)))
        return itemsize * (blk_in + blk_out + scratch)

    # Largest NC-divisor tile that fits the budget, capped so the grid has
    # >= 2 steps (lets dimension_semantics=("parallel",) use both v7x cores).
    max_t = NC if NC < 2 else max(1, NC // 2)
    tile_nc = 1
    for cand in range(max_t, 0, -1):
        if NC % cand == 0 and per_tile_bytes(cand) <= budget:
            tile_nc = cand
            break
    # TODO(synk): add an H grid axis with a (kernel_size - stride) row halo for
    # inputs so large that even a single-channel tile overflows VMEM.

    vmem_limit = int(min(vmem_cap, 128 << 20,
                         max(int(per_tile_bytes(tile_nc) * 1.2) + (2 << 20),
                             32 << 20)))

    kernel = functools.partial(
        _maxpool_kernel, ksize=kernel_size, stride=stride, padding=padding,
        pad_val=pad_val)

    cost = pl.CostEstimate(
        flops=kernel_size * kernel_size * NC * out_h * out_w,
        transcendentals=0,
        bytes_accessed=itemsize * (NC * H * W + NC * out_h * out_w))

    out = pl.pallas_call(
        kernel,
        out_shape=jax.ShapeDtypeStruct((NC, out_h, out_w), dtype),
        grid=(NC // tile_nc,),
        in_specs=[pl.BlockSpec((tile_nc, H, W), lambda i: (i, 0, 0))],
        out_specs=pl.BlockSpec((tile_nc, out_h, out_w), lambda i: (i, 0, 0)),
        scratch_shapes=[
            pltpu.VMEM((tile_nc, out_h, W), dtype),
            pltpu.VMEM((out_h, W, tile_nc), dtype),
            pltpu.VMEM((out_h, out_w, tile_nc), dtype),
        ],
        compiler_params=pltpu.CompilerParams(
            dimension_semantics=("parallel",),
            vmem_limit_bytes=vmem_limit),
        cost_estimate=cost,
    )(x3)

    return out.reshape(N, C, out_h, out_w)


if __name__ == "__main__":
    # MaxPool(kernel_size=3, stride=2, padding=1), x: (2, 4, 16, 16)
    kernel_size, stride, padding = 3, 2, 1
    key = jax.random.PRNGKey(0)
    x = jax.random.normal(key, (2, 4, 16, 16), dtype=jnp.float32)

    y = max_pool2d_pallas(x, kernel_size, stride, padding)
    y = jax.block_until_ready(y)

    # Reference: lax.reduce_window on a -inf-padded input (== MaxPool2d).
    x_pad = jnp.pad(
        x, ((0, 0), (0, 0), (padding, padding), (padding, padding)),
        constant_values=-jnp.inf)
    y_ref = jax.lax.reduce_window(
        x_pad, -jnp.inf, jax.lax.max,
        window_dimensions=(1, 1, kernel_size, kernel_size),
        window_strides=(1, 1, stride, stride),
        padding="VALID")
    assert y.shape == y_ref.shape == (2, 4, 8, 8), y.shape
    assert jnp.allclose(y, y_ref), "mismatch vs reference reduce_window"

    print("KERNEL_OK")
</pallas_src>

<mosaic_0001>
module attributes {stable_mosaic.version = 11 : i64} {
  func.func @_maxpool_kernel(%arg0: i32, %arg1: memref<4x16x16xf32, #tpu.memory_space<vmem>>, %arg2: memref<4x8x8xf32, #tpu.memory_space<vmem>>, %arg3: memref<4x8x16xf32, #tpu.memory_space<vmem>>, %arg4: memref<8x16x4xf32, #tpu.memory_space<vmem>>, %arg5: memref<8x8x4xf32, #tpu.memory_space<vmem>>) attributes {dimension_semantics = [#tpu.dimension_semantics<parallel>], iteration_bounds = array<i64: 2>, scalar_prefetch = 0 : i64, scratch_operands = 3 : i64, tpu.core_type = #tpu.core_type<tc>, window_params = [{transform_indices = @transform_0, window_bounds = array<i64: 4, 16, 16>}, {transform_indices = @transform_1, window_bounds = array<i64: 4, 8, 8>}]} {
    %c0 = arith.constant 0 : index
    %c1 = arith.constant 1 : index
    %c0_0 = arith.constant 0 : index
    %0 = tpu.strided_load %arg1[%c0, %c1, %c0_0] {strides = array<i32: 1, 2, 1>} : memref<4x16x16xf32, #tpu.memory_space<vmem>>, vector<4x7x16xf32>
    %cst = arith.constant 0xFF800000 : f32
    %1 = vector.broadcast %cst : f32 to vector<4x1x16xf32>
    %c0_1 = arith.constant 0 : index
    %c0_2 = arith.constant 0 : index
    %c0_3 = arith.constant 0 : index
    %2 = vector.load %arg3[%c0_1, %c0_2, %c0_3] : memref<4x8x16xf32, #tpu.memory_space<vmem>>, vector<4x1x16xf32>
    tpu.vector_store %arg3[%c0_1, %c0_2, %c0_3], %1 {strides = array<i32>} : memref<4x8x16xf32, #tpu.memory_space<vmem>>, vector<4x1x16xf32>,
    %c0_4 = arith.constant 0 : index
    %c1_5 = arith.constant 1 : index
    %c0_6 = arith.constant 0 : index
    %3 = vector.load %arg3[%c0_4, %c1_5, %c0_6] : memref<4x8x16xf32, #tpu.memory_space<vmem>>, vector<4x7x16xf32>
    tpu.vector_store %arg3[%c0_4, %c1_5, %c0_6], %0 {strides = array<i32>} : memref<4x8x16xf32, #tpu.memory_space<vmem>>, vector<4x7x16xf32>,
    %c0_7 = arith.constant 0 : index
    %c0_8 = arith.constant 0 : index
    %c0_9 = arith.constant 0 : index
    %4 = tpu.strided_load %arg1[%c0_7, %c0_8, %c0_9] {strides = array<i32: 1, 2, 1>} : memref<4x16x16xf32, #tpu.memory_space<vmem>>, vector<4x8x16xf32>
    %c0_10 = arith.constant 0 : index
    %c0_11 = arith.constant 0 : index
    %c0_12 = arith.constant 0 : index
    %5 = vector.load %arg3[%c0_10, %c0_11, %c0_12] : memref<4x8x16xf32, #tpu.memory_space<vmem>>, vector<4x8x16xf32>
    %6 = arith.maximumf %5, %4 : vector<4x8x16xf32>
    %c0_13 = arith.constant 0 : index
    %c0_14 = arith.constant 0 : index
    %c0_15 = arith.constant 0 : index
    %7 = vector.load %arg3[%c0_13, %c0_14, %c0_15] : memref<4x8x16xf32, #tpu.memory_space<vmem>>, vector<4x8x16xf32>
    tpu.vector_store %arg3[%c0_13, %c0_14, %c0_15], %6 {strides = array<i32>} : memref<4x8x16xf32, #tpu.memory_space<vmem>>, vector<4x8x16xf32>,
    %c0_16 = arith.constant 0 : index
    %c1_17 = arith.constant 1 : index
    %c0_18 = arith.constant 0 : index
    %8 = tpu.strided_load %arg1[%c0_16, %c1_17, %c0_18] {strides = array<i32: 1, 2, 1>} : memref<4x16x16xf32, #tpu.memory_space<vmem>>, vector<4x8x16xf32>
    %c0_19 = arith.constant 0 : index
    %c0_20 = arith.constant 0 : index
    %c0_21 = arith.constant 0 : index
    %9 = vector.load %arg3[%c0_19, %c0_20, %c0_21] : memref<4x8x16xf32, #tpu.memory_space<vmem>>, vector<4x8x16xf32>
    %10 = arith.maximumf %9, %8 : vector<4x8x16xf32>
    %c0_22 = arith.constant 0 : index
    %c0_23 = arith.constant 0 : index
    %c0_24 = arith.constant 0 : index
    %11 = vector.load %arg3[%c0_22, %c0_23, %c0_24] : memref<4x8x16xf32, #tpu.memory_space<vmem>>, vector<4x8x16xf32>
    tpu.vector_store %arg3[%c0_22, %c0_23, %c0_24], %10 {strides = array<i32>} : memref<4x8x16xf32, #tpu.memory_space<vmem>>, vector<4x8x16xf32>,
    %c0_25 = arith.constant 0 : index
    %c0_26 = arith.constant 0 : index
    %c0_27 = arith.constant 0 : index
    %12 = vector.load %arg3[%c0_25, %c0_26, %c0_27] : memref<4x8x16xf32, #tpu.memory_space<vmem>>, vector<4x1x16xf32>
    %13 = vector.shape_cast %12 : vector<4x1x16xf32> to vector<4x16xf32>
    %14 = tpu.transpose %13, [1, 0] : vector<4x16xf32> -> vector<16x4xf32>
    %c0_28 = arith.constant 0 : index
    %c0_29 = arith.constant 0 : index
    %c0_30 = arith.constant 0 : index
    %15 = vector.load %arg4[%c0_28, %c0_29, %c0_30] : memref<8x16x4xf32, #tpu.memory_space<vmem>>, vector<1x16x4xf32>
    %16 = vector.shape_cast %15 : vector<1x16x4xf32> to vector<16x4xf32>
    %17 = vector.shape_cast %14 : vector<16x4xf32> to vector<1x16x4xf32>
    tpu.vector_store %arg4[%c0_28, %c0_29, %c0_30], %17 {strides = array<i32>} : memref<8x16x4xf32, #tpu.memory_space<vmem>>, vector<1x16x4xf32>,
    %c0_31 = arith.constant 0 : index
    %c1_32 = arith.constant 1 : index
    %c0_33 = arith.constant 0 : index
    %18 = vector.load %arg3[%c0_31, %c1_32, %c0_33] : memref<4x8x16xf32, #tpu.memory_space<vmem>>, vector<4x1x16xf32>
    %19 = vector.shape_cast %18 : vector<4x1x16xf32> to vector<4x16xf32>
    %20 = tpu.transpose %19, [1, 0] : vector<4x16xf32> -> vector<16x4xf32>
    %c1_34 = arith.constant 1 : index
    %c0_35 = arith.constant 0 : index
    %c0_36 = arith.constant 0 : index
    %21 = vector.load %arg4[%c1_34, %c0_35, %c0_36] : memref<8x16x4xf32, #tpu.memory_space<vmem>>, vector<1x16x4xf32>
    %22 = vector.shape_cast %21 : vector<1x16x4xf32> to vector<16x4xf32>
    %23 = vector.shape_cast %20 : vector<16x4xf32> to vector<1x16x4xf32>
    tpu.vector_store %arg4[%c1_34, %c0_35, %c0_36], %23 {strides = array<i32>} : memref<8x16x4xf32, #tpu.memory_space<vmem>>, vector<1x16x4xf32>,
    %c0_37 = arith.constant 0 : index
    %c2 = arith.constant 2 : index
    %c0_38 = arith.constant 0 : index
    %24 = vector.load %arg3[%c0_37, %c2, %c0_38] : memref<4x8x16xf32, #tpu.memory_space<vmem>>, vector<4x1x16xf32>
    %25 = vector.shape_cast %24 : vector<4x1x16xf32> to vector<4x16xf32>
    %26 = tpu.transpose %25, [1, 0] : vector<4x16xf32> -> vector<16x4xf32>
    %c2_39 = arith.constant 2 : index
    %c0_40 = arith.constant 0 : index
    %c0_41 = arith.constant 0 : index
    %27 = vector.load %arg4[%c2_39, %c0_40, %c0_41] : memref<8x16x4xf32, #tpu.memory_space<vmem>>, vector<1x16x4xf32>
    %28 = vector.shape_cast %27 : vector<1x16x4xf32> to vector<16x4xf32>
    %29 = vector.shape_cast %26 : vector<16x4xf32> to vector<1x16x4xf32>
    tpu.vector_store %arg4[%c2_39, %c0_40, %c0_41], %29 {strides = array<i32>} : memref<8x16x4xf32, #tpu.memory_space<vmem>>, vector<1x16x4xf32>,
    %c0_42 = arith.constant 0 : index
    %c3 = arith.constant 3 : index
    %c0_43 = arith.constant 0 : index
    %30 = vector.load %arg3[%c0_42, %c3, %c0_43] : memref<4x8x16xf32, #tpu.memory_space<vmem>>, vector<4x1x16xf32>
    %31 = vector.shape_cast %30 : vector<4x1x16xf32> to vector<4x16xf32>
    %32 = tpu.transpose %31, [1, 0] : vector<4x16xf32> -> vector<16x4xf32>
    %c3_44 = arith.constant 3 : index
    %c0_45 = arith.constant 0 : index
    %c0_46 = arith.constant 0 : index
    %33 = vector.load %arg4[%c3_44, %c0_45, %c0_46] : memref<8x16x4xf32, #tpu.memory_space<vmem>>, vector<1x16x4xf32>
    %34 = vector.shape_cast %33 : vector<1x16x4xf32> to vector<16x4xf32>
    %35 = vector.shape_cast %32 : vector<16x4xf32> to vector<1x16x4xf32>
    tpu.vector_store %arg4[%c3_44, %c0_45, %c0_46], %35 {strides = array<i32>} : memref<8x16x4xf32, #tpu.memory_space<vmem>>, vector<1x16x4xf32>,
    %c0_47 = arith.constant 0 : index
    %c4 = arith.constant 4 : index
    %c0_48 = arith.constant 0 : index
    %36 = vector.load %arg3[%c0_47, %c4, %c0_48] : memref<4x8x16xf32, #tpu.memory_space<vmem>>, vector<4x1x16xf32>
    %37 = vector.shape_cast %36 : vector<4x1x16xf32> to vector<4x16xf32>
    %38 = tpu.transpose %37, [1, 0] : vector<4x16xf32> -> vector<16x4xf32>
    %c4_49 = arith.constant 4 : index
    %c0_50 = arith.constant 0 : index
    %c0_51 = arith.constant 0 : index
    %39 = vector.load %arg4[%c4_49, %c0_50, %c0_51] : memref<8x16x4xf32, #tpu.memory_space<vmem>>, vector<1x16x4xf32>
    %40 = vector.shape_cast %39 : vector<1x16x4xf32> to vector<16x4xf32>
    %41 = vector.shape_cast %38 : vector<16x4xf32> to vector<1x16x4xf32>
    tpu.vector_store %arg4[%c4_49, %c0_50, %c0_51], %41 {strides = array<i32>} : memref<8x16x4xf32, #tpu.memory_space<vmem>>, vector<1x16x4xf32>,
    %c0_52 = arith.constant 0 : index
    %c5 = arith.constant 5 : index
    %c0_53 = arith.constant 0 : index
    %42 = vector.load %arg3[%c0_52, %c5, %c0_53] : memref<4x8x16xf32, #tpu.memory_space<vmem>>, vector<4x1x16xf32>
    %43 = vector.shape_cast %42 : vector<4x1x16xf32> to vector<4x16xf32>
    %44 = tpu.transpose %43, [1, 0] : vector<4x16xf32> -> vector<16x4xf32>
    %c5_54 = arith.constant 5 : index
    %c0_55 = arith.constant 0 : index
    %c0_56 = arith.constant 0 : index
    %45 = vector.load %arg4[%c5_54, %c0_55, %c0_56] : memref<8x16x4xf32, #tpu.memory_space<vmem>>, vector<1x16x4xf32>
    %46 = vector.shape_cast %45 : vector<1x16x4xf32> to vector<16x4xf32>
    %47 = vector.shape_cast %44 : vector<16x4xf32> to vector<1x16x4xf32>
    tpu.vector_store %arg4[%c5_54, %c0_55, %c0_56], %47 {strides = array<i32>} : memref<8x16x4xf32, #tpu.memory_space<vmem>>, vector<1x16x4xf32>,
    %c0_57 = arith.constant 0 : index
    %c6 = arith.constant 6 : index
    %c0_58 = arith.constant 0 : index
    %48 = vector.load %arg3[%c0_57, %c6, %c0_58] : memref<4x8x16xf32, #tpu.memory_space<vmem>>, vector<4x1x16xf32>
    %49 = vector.shape_cast %48 : vector<4x1x16xf32> to vector<4x16xf32>
    %50 = tpu.transpose %49, [1, 0] : vector<4x16xf32> -> vector<16x4xf32>
    %c6_59 = arith.constant 6 : index
    %c0_60 = arith.constant 0 : index
    %c0_61 = arith.constant 0 : index
    %51 = vector.load %arg4[%c6_59, %c0_60, %c0_61] : memref<8x16x4xf32, #tpu.memory_space<vmem>>, vector<1x16x4xf32>
    %52 = vector.shape_cast %51 : vector<1x16x4xf32> to vector<16x4xf32>
    %53 = vector.shape_cast %50 : vector<16x4xf32> to vector<1x16x4xf32>
    tpu.vector_store %arg4[%c6_59, %c0_60, %c0_61], %53 {strides = array<i32>} : memref<8x16x4xf32, #tpu.memory_space<vmem>>, vector<1x16x4xf32>,
    %c0_62 = arith.constant 0 : index
    %c7 = arith.constant 7 : index
    %c0_63 = arith.constant 0 : index
    %54 = vector.load %arg3[%c0_62, %c7, %c0_63] : memref<4x8x16xf32, #tpu.memory_space<vmem>>, vector<4x1x16xf32>
    %55 = vector.shape_cast %54 : vector<4x1x16xf32> to vector<4x16xf32>
    %56 = tpu.transpose %55, [1, 0] : vector<4x16xf32> -> vector<16x4xf32>
    %c7_64 = arith.constant 7 : index
    %c0_65 = arith.constant 0 : index
    %c0_66 = arith.constant 0 : index
    %57 = vector.load %arg4[%c7_64, %c0_65, %c0_66] : memref<8x16x4xf32, #tpu.memory_space<vmem>>, vector<1x16x4xf32>
    %58 = vector.shape_cast %57 : vector<1x16x4xf32> to vector<16x4xf32>
    %59 = vector.shape_cast %56 : vector<16x4xf32> to vector<1x16x4xf32>
    tpu.vector_store %arg4[%c7_64, %c0_65, %c0_66], %59 {strides = array<i32>} : memref<8x16x4xf32, #tpu.memory_space<vmem>>, vector<1x16x4xf32>,
    %c0_67 = arith.constant 0 : index
    %c1_68 = arith.constant 1 : index
    %c0_69 = arith.constant 0 : index
    %60 = tpu.strided_load %arg4[%c0_67, %c1_68, %c0_69] {strides = array<i32: 1, 2, 1>} : memref<8x16x4xf32, #tpu.memory_space<vmem>>, vector<8x7x4xf32>
    %cst_70 = arith.constant 0xFF800000 : f32
    %61 = vector.broadcast %cst_70 : f32 to vector<8x1x4xf32>
    %c0_71 = arith.constant 0 : index
    %c0_72 = arith.constant 0 : index
    %c0_73 = arith.constant 0 : index
    %62 = vector.load %arg5[%c0_71, %c0_72, %c0_73] : memref<8x8x4xf32, #tpu.memory_space<vmem>>, vector<8x1x4xf32>
    tpu.vector_store %arg5[%c0_71, %c0_72, %c0_73], %61 {strides = array<i32>} : memref<8x8x4xf32, #tpu.memory_space<vmem>>, vector<8x1x4xf32>,
    %c0_74 = arith.constant 0 : index
    %c1_75 = arith.constant 1 : index
    %c0_76 = arith.constant 0 : index
    %63 = vector.load %arg5[%c0_74, %c1_75, %c0_76] : memref<8x8x4xf32, #tpu.memory_space<vmem>>, vector<8x7x4xf32>
    tpu.vector_store %arg5[%c0_74, %c1_75, %c0_76], %60 {strides = array<i32>} : memref<8x8x4xf32, #tpu.memory_space<vmem>>, vector<8x7x4xf32>,
    %c0_77 = arith.constant 0 : index
    %c0_78 = arith.constant 0 : index
    %c0_79 = arith.constant 0 : index
    %64 = tpu.strided_load %arg4[%c0_77, %c0_78, %c0_79] {strides = array<i32: 1, 2, 1>} : memref<8x16x4xf32, #tpu.memory_space<vmem>>, vector<8x8x4xf32>
    %c0_80 = arith.constant 0 : index
    %c0_81 = arith.constant 0 : index
    %c0_82 = arith.constant 0 : index
    %65 = vector.load %arg5[%c0_80, %c0_81, %c0_82] : memref<8x8x4xf32, #tpu.memory_space<vmem>>, vector<8x8x4xf32>
    %66 = arith.maximumf %65, %64 : vector<8x8x4xf32>
    %c0_83 = arith.constant 0 : index
    %c0_84 = arith.constant 0 : index
    %c0_85 = arith.constant 0 : index
    %67 = vector.load %arg5[%c0_83, %c0_84, %c0_85] : memref<8x8x4xf32, #tpu.memory_space<vmem>>, vector<8x8x4xf32>
    tpu.vector_store %arg5[%c0_83, %c0_84, %c0_85], %66 {strides = array<i32>} : memref<8x8x4xf32, #tpu.memory_space<vmem>>, vector<8x8x4xf32>,
    %c0_86 = arith.constant 0 : index
    %c1_87 = arith.constant 1 : index
    %c0_88 = arith.constant 0 : index
    %68 = tpu.strided_load %arg4[%c0_86, %c1_87, %c0_88] {strides = array<i32: 1, 2, 1>} : memref<8x16x4xf32, #tpu.memory_space<vmem>>, vector<8x8x4xf32>
    %c0_89 = arith.constant 0 : index
    %c0_90 = arith.constant 0 : index
    %c0_91 = arith.constant 0 : index
    %69 = vector.load %arg5[%c0_89, %c0_90, %c0_91] : memref<8x8x4xf32, #tpu.memory_space<vmem>>, vector<8x8x4xf32>
    %70 = arith.maximumf %69, %68 : vector<8x8x4xf32>
    %c0_92 = arith.constant 0 : index
    %c0_93 = arith.constant 0 : index
    %c0_94 = arith.constant 0 : index
    %71 = vector.load %arg5[%c0_92, %c0_93, %c0_94] : memref<8x8x4xf32, #tpu.memory_space<vmem>>, vector<8x8x4xf32>
    tpu.vector_store %arg5[%c0_92, %c0_93, %c0_94], %70 {strides = array<i32>} : memref<8x8x4xf32, #tpu.memory_space<vmem>>, vector<8x8x4xf32>,
    %c0_95 = arith.constant 0 : index
    %c0_96 = arith.constant 0 : index
    %c0_97 = arith.constant 0 : index
    %72 = vector.load %arg5[%c0_95, %c0_96, %c0_97] : memref<8x8x4xf32, #tpu.memory_space<vmem>>, vector<1x8x4xf32>
    %73 = vector.shape_cast %72 : vector<1x8x4xf32> to vector<8x4xf32>
    %74 = tpu.transpose %73, [1, 0] : vector<8x4xf32> -> vector<4x8xf32>
    %c0_98 = arith.constant 0 : index
    %c0_99 = arith.constant 0 : index
    %c0_100 = arith.constant 0 : index
    %75 = vector.load %arg2[%c0_98, %c0_99, %c0_100] : memref<4x8x8xf32, #tpu.memory_space<vmem>>, vector<4x1x8xf32>
    %76 = vector.shape_cast %75 : vector<4x1x8xf32> to vector<4x8xf32>
    %77 = vector.shape_cast %74 : vector<4x8xf32> to vector<4x1x8xf32>
    tpu.vector_store %arg2[%c0_98, %c0_99, %c0_100], %77 {strides = array<i32>} : memref<4x8x8xf32, #tpu.memory_space<vmem>>, vector<4x1x8xf32>,
    %c1_101 = arith.constant 1 : index
    %c0_102 = arith.constant 0 : index
    %c0_103 = arith.constant 0 : index
    %78 = vector.load %arg5[%c1_101, %c0_102, %c0_103] : memref<8x8x4xf32, #tpu.memory_space<vmem>>, vector<1x8x4xf32>
    %79 = vector.shape_cast %78 : vector<1x8x4xf32> to vector<8x4xf32>
    %80 = tpu.transpose %79, [1, 0] : vector<8x4xf32> -> vector<4x8xf32>
    %c0_104 = arith.constant 0 : index
    %c1_105 = arith.constant 1 : index
    %c0_106 = arith.constant 0 : index
    %81 = vector.load %arg2[%c0_104, %c1_105, %c0_106] : memref<4x8x8xf32, #tpu.memory_space<vmem>>, vector<4x1x8xf32>
    %82 = vector.shape_cast %81 : vector<4x1x8xf32> to vector<4x8xf32>
    %83 = vector.shape_cast %80 : vector<4x8xf32> to vector<4x1x8xf32>
    tpu.vector_store %arg2[%c0_104, %c1_105, %c0_106], %83 {strides = array<i32>} : memref<4x8x8xf32, #tpu.memory_space<vmem>>, vector<4x1x8xf32>,
    %c2_107 = arith.constant 2 : index
    %c0_108 = arith.constant 0 : index
    %c0_109 = arith.constant 0 : index
    %84 = vector.load %arg5[%c2_107, %c0_108, %c0_109] : memref<8x8x4xf32, #tpu.memory_space<vmem>>, vector<1x8x4xf32>
    %85 = vector.shape_cast %84 : vector<1x8x4xf32> to vector<8x4xf32>
    %86 = tpu.transpose %85, [1, 0] : vector<8x4xf32> -> vector<4x8xf32>
    %c0_110 = arith.constant 0 : index
    %c2_111 = arith.constant 2 : index
    %c0_112 = arith.constant 0 : index
    %87 = vector.load %arg2[%c0_110, %c2_111, %c0_112] : memref<4x8x8xf32, #tpu.memory_space<vmem>>, vector<4x1x8xf32>
    %88 = vector.shape_cast %87 : vector<4x1x8xf32> to vector<4x8xf32>
    %89 = vector.shape_cast %86 : vector<4x8xf32> to vector<4x1x8xf32>
    tpu.vector_store %arg2[%c0_110, %c2_111, %c0_112], %89 {strides = array<i32>} : memref<4x8x8xf32, #tpu.memory_space<vmem>>, vector<4x1x8xf32>,
    %c3_113 = arith.constant 3 : index
    %c0_114 = arith.constant 0 : index
    %c0_115 = arith.constant 0 : index
    %90 = vector.load %arg5[%c3_113, %c0_114, %c0_115] : memref<8x8x4xf32, #tpu.memory_space<vmem>>, vector<1x8x4xf32>
    %91 = vector.shape_cast %90 : vector<1x8x4xf32> to vector<8x4xf32>
    %92 = tpu.transpose %91, [1, 0] : vector<8x4xf32> -> vector<4x8xf32>
    %c0_116 = arith.constant 0 : index
    %c3_117 = arith.constant 3 : index
    %c0_118 = arith.constant 0 : index
    %93 = vector.load %arg2[%c0_116, %c3_117, %c0_118] : memref<4x8x8xf32, #tpu.memory_space<vmem>>, vector<4x1x8xf32>
    %94 = vector.shape_cast %93 : vector<4x1x8xf32> to vector<4x8xf32>
    %95 = vector.shape_cast %92 : vector<4x8xf32> to vector<4x1x8xf32>
    tpu.vector_store %arg2[%c0_116, %c3_117, %c0_118], %95 {strides = array<i32>} : memref<4x8x8xf32, #tpu.memory_space<vmem>>, vector<4x1x8xf32>,
    %c4_119 = arith.constant 4 : index
    %c0_120 = arith.constant 0 : index
    %c0_121 = arith.constant 0 : index
    %96 = vector.load %arg5[%c4_119, %c0_120, %c0_121] : memref<8x8x4xf32, #tpu.memory_space<vmem>>, vector<1x8x4xf32>
    %97 = vector.shape_cast %96 : vector<1x8x4xf32> to vector<8x4xf32>
    %98 = tpu.transpose %97, [1, 0] : vector<8x4xf32> -> vector<4x8xf32>
    %c0_122 = arith.constant 0 : index
    %c4_123 = arith.constant 4 : index
    %c0_124 = arith.constant 0 : index
    %99 = vector.load %arg2[%c0_122, %c4_123, %c0_124] : memref<4x8x8xf32, #tpu.memory_space<vmem>>, vector<4x1x8xf32>
    %100 = vector.shape_cast %99 : vector<4x1x8xf32> to vector<4x8xf32>
    %101 = vector.shape_cast %98 : vector<4x8xf32> to vector<4x1x8xf32>
    tpu.vector_store %arg2[%c0_122, %c4_123, %c0_124], %101 {strides = array<i32>} : memref<4x8x8xf32, #tpu.memory_space<vmem>>, vector<4x1x8xf32>,
    %c5_125 = arith.constant 5 : index
    %c0_126 = arith.constant 0 : index
    %c0_127 = arith.constant 0 : index
    %102 = vector.load %arg5[%c5_125, %c0_126, %c0_127] : memref<8x8x4xf32, #tpu.memory_space<vmem>>, vector<1x8x4xf32>
    %103 = vector.shape_cast %102 : vector<1x8x4xf32> to vector<8x4xf32>
    %104 = tpu.transpose %103, [1, 0] : vector<8x4xf32> -> vector<4x8xf32>
    %c0_128 = arith.constant 0 : index
    %c5_129 = arith.constant 5 : index
    %c0_130 = arith.constant 0 : index
    %105 = vector.load %arg2[%c0_128, %c5_129, %c0_130] : memref<4x8x8xf32, #tpu.memory_space<vmem>>, vector<4x1x8xf32>
    %106 = vector.shape_cast %105 : vector<4x1x8xf32> to vector<4x8xf32>
    %107 = vector.shape_cast %104 : vector<4x8xf32> to vector<4x1x8xf32>
    tpu.vector_store %arg2[%c0_128, %c5_129, %c0_130], %107 {strides = array<i32>} : memref<4x8x8xf32, #tpu.memory_space<vmem>>, vector<4x1x8xf32>,
    %c6_131 = arith.constant 6 : index
    %c0_132 = arith.constant 0 : index
    %c0_133 = arith.constant 0 : index
    %108 = vector.load %arg5[%c6_131, %c0_132, %c0_133] : memref<8x8x4xf32, #tpu.memory_space<vmem>>, vector<1x8x4xf32>
    %109 = vector.shape_cast %108 : vector<1x8x4xf32> to vector<8x4xf32>
    %110 = tpu.transpose %109, [1, 0] : vector<8x4xf32> -> vector<4x8xf32>
    %c0_134 = arith.constant 0 : index
    %c6_135 = arith.constant 6 : index
    %c0_136 = arith.constant 0 : index
    %111 = vector.load %arg2[%c0_134, %c6_135, %c0_136] : memref<4x8x8xf32, #tpu.memory_space<vmem>>, vector<4x1x8xf32>
    %112 = vector.shape_cast %111 : vector<4x1x8xf32> to vector<4x8xf32>
    %113 = vector.shape_cast %110 : vector<4x8xf32> to vector<4x1x8xf32>
    tpu.vector_store %arg2[%c0_134, %c6_135, %c0_136], %113 {strides = array<i32>} : memref<4x8x8xf32, #tpu.memory_space<vmem>>, vector<4x1x8xf32>,
    %c7_137 = arith.constant 7 : index
    %c0_138 = arith.constant 0 : index
    %c0_139 = arith.constant 0 : index
    %114 = vector.load %arg5[%c7_137, %c0_138, %c0_139] : memref<8x8x4xf32, #tpu.memory_space<vmem>>, vector<1x8x4xf32>
    %115 = vector.shape_cast %114 : vector<1x8x4xf32> to vector<8x4xf32>
    %116 = tpu.transpose %115, [1, 0] : vector<8x4xf32> -> vector<4x8xf32>
    %c0_140 = arith.constant 0 : index
    %c7_141 = arith.constant 7 : index
    %c0_142 = arith.constant 0 : index
    %117 = vector.load %arg2[%c0_140, %c7_141, %c0_142] : memref<4x8x8xf32, #tpu.memory_space<vmem>>, vector<4x1x8xf32>
    %118 = vector.shape_cast %117 : vector<4x1x8xf32> to vector<4x8xf32>
    %119 = vector.shape_cast %116 : vector<4x8xf32> to vector<4x1x8xf32>
    tpu.vector_store %arg2[%c0_140, %c7_141, %c0_142], %119 {strides = array<i32>} : memref<4x8x8xf32, #tpu.memory_space<vmem>>, vector<4x1x8xf32>,
    return
  }
  func.func @transform_0(%arg0: i32) -> (i32, i32, i32) {
    %c0_i32 = arith.constant 0 : i32
    %c0_i32_0 = arith.constant 0 : i32
    %c0_i32_1 = arith.constant 0 : i32
    return %arg0, %c0_i32, %c0_i32_0 : i32, i32, i32
  }
  func.func @transform_1(%arg0: i32) -> (i32, i32, i32) {
    %c0_i32 = arith.constant 0 : i32
    %c0_i32_0 = arith.constant 0 : i32
    %c0_i32_1 = arith.constant 0 : i32
    return %arg0, %c0_i32, %c0_i32_0 : i32, i32, i32
  }
}

</mosaic_0001>

<llo_original>
// kernel: tpu_custom_call.1
$region0: #{tpu_custom_call.1}
  #allocation0 [shape = 'u32[]', space=smem, size = 0x4, offset = 0x4, fixed_abs, tag = 'smem constant byte address 0x4 - core index']
  #allocation1 [shape = 'u32[144,128]{1,0:T(1,128)}', space=vmem, size = 0x12000, scoped, tag = 'internal scratch']
  #allocation2 [shape = 'f32[4,8,16]{2,1,0:T(8,128)}', space=vmem, size = 0x4000, scoped, tag = 'scratch operand']
  #allocation3 [shape = 'f32[8,16,4]{2,1,0:T(8,128)}', space=vmem, size = 0x10000, scoped, tag = 'scratch operand']
  #allocation4 [shape = 'f32[8,8,4]{2,1,0:T(8,128)}', space=vmem, size = 0x8000, scoped, tag = 'scratch operand']
  %s0 = inlined_call_operand.hbm [shape: f32[8,16,16], index: 0, kind: input, shape index: {}]
  %s1 = inlined_call_operand.hbm [shape: f32[8,8,8], index: 1, kind: output, shape index: {}]
  %s2 = sld [smem:[#allocation0]]
  $region41: #{tpu_custom_call.1} parent=0
    _
  %s4 = ssub.s32 1, %s2
  %s5 = scalar_select 0, %s4, %s2
  $region1: #{tpu_custom_call.1} parent=0
    #allocation5 [shape = 'u8[65536]{0}', space=vmem, size = 0x10000, scoped, tag = 'input window, operand 0']
    #allocation6 [shape = 's32[2]{0}', space=sflag, size = 0x8, scoped, tag = 'scoped memory for tpu_custom_call.1']
    #allocation7 [shape = 's32[2]{0}', space=sflag, size = 0x8, scoped, tag = 'scoped memory for tpu_custom_call.1']
    #allocation8 [shape = 'u8[32768]{0}', space=vmem, size = 0x8000, scoped, tag = 'output window, operand 0']
    %6 = vsyncpa [#allocation6], 0
    %s7 = scalar_lea.sflag [#allocation6], 1
    %8 = vsyncpa %s7, 0
    %9 = vsyncpa [#allocation7], 0
    %s10 = scalar_lea.sflag [#allocation7], 1
    %11 = vsyncpa %s10, 0
    loop: start=0, step=1, limit=4
    $region2: #{tpu_custom_call.1} parent=1 // loop_pre_header
      _
    $region3: #{tpu_custom_call.1} parent=1 // loop_header
      %s13 = sphi 0, %s17
      %p14 = scmp.ge.s32.totalorder %s13, 4
      %s23 = sphi 0, %s25
      %s26 = sphi 0, %s23
      %s27 = sphi 0, %s26
      %s43 = sphi 0, %s27
      %s49 = sphi 0, %s51
      %s52 = sphi 0, %s49
      %s53 = sphi 0, %s52
      %s69 = sphi 0, %s53
    $region4: #{tpu_custom_call.1} parent=1 // loop_header_branch
      %16 = sbr.rel (%p14) target = $region8
    $region5: #{tpu_custom_call.1} parent=1 // loop_body
      %s18 = ssub.s32 %s13, 1
      %s19 = ssub.s32 %s13, 2
      %s20 = sadd.s32 %s13, 1
      %s21 = ssub.s32 %s13, %s20
      %p22 = scmp.eq.s32.totalorder %s21, 0
      %s24 = sadd.s32 %s23, 1
      %s25 = scalar_select %p22, %s23, %s24
      %p28 = pneg %p22
      %p29 = scmp.eq.s32.totalorder %s13, 1
      %p30 = por %p28, %p29
      %p31 = scmp.ne.s32.totalorder %s23, %s26
      %p32 = scmp.eq.s32.totalorder %s13, 0
      %p33 = por %p31, %p32
      %p34 = scmp.ne.s32.totalorder %s23, %s26
      %p35 = scmp.eq.s32.totalorder %s18, 1
      %p36 = por %p34, %p35
      %p37 = scmp.ne.s32.totalorder %s26, %s27
      %p38 = scmp.eq.s32.totalorder %s18, 0
      %p39 = por %p37, %p38
      %p40 = scmp.ne.s32.totalorder %s26, %s27
      %p41 = scmp.eq.s32.totalorder %s19, 1
      %p42 = por %p40, %p41
      %p44 = scmp.ne.s32.totalorder %s27, %s43
      %p45 = scmp.eq.s32.totalorder %s19, 0
      %p46 = por %p44, %p45
      %s47 = ssub.s32 %s13, %s20
      %p48 = scmp.eq.s32.totalorder %s47, 0
      %s50 = sadd.s32 %s49, 1
      %s51 = scalar_select %p48, %s49, %s50
      %p54 = pneg %p48
      %p55 = scmp.eq.s32.totalorder %s13, 1
      %p56 = por %p54, %p55
      %p57 = scmp.ne.s32.totalorder %s49, %s52
      %p58 = scmp.eq.s32.totalorder %s13, 0
      %p59 = por %p57, %p58
      %p60 = scmp.ne.s32.totalorder %s49, %s52
      %p61 = scmp.eq.s32.totalorder %s18, 1
      %p62 = por %p60, %p61
      %p63 = scmp.ne.s32.totalorder %s52, %s53
      %p64 = scmp.eq.s32.totalorder %s18, 0
      %p65 = por %p63, %p64
      %p66 = scmp.ne.s32.totalorder %s52, %s53
      %p67 = scmp.eq.s32.totalorder %s19, 1
      %p68 = por %p66, %p67
      %p70 = scmp.ne.s32.totalorder %s53, %s69
      %p71 = scmp.eq.s32.totalorder %s19, 0
      %p72 = por %p70, %p71
      %p73 = scmp.le.s32.totalorder 1, %s13
      %p74 = scmp.lt.s32.totalorder %s13, 3
      %p75 = pnand %p73, %p74
      %p76 = pneg %p75
      // Predicated region
      $region9: #{tpu_custom_call.1} parent=5 // pred_check
        _
      $region10: #{tpu_custom_call.1} parent=5 // pred_check_branch
        %78 = sbr.rel (%p75) target = $region12
      $region11: #{tpu_custom_call.1} parent=5 // pred_region
        %s79 = ssub.s32 %s13, 1
      $region12: #{tpu_custom_call.1} parent=5 // pred_fallthru
        _
      %p80 = scmp.lt.s32.totalorder %s13, 2
      // Predicated region
      $region13: #{tpu_custom_call.1} parent=5 // pred_check
        %p81 = pneg %p80
      $region14: #{tpu_custom_call.1} parent=5 // pred_check_branch
        %83 = sbr.rel (%p81) target = $region16
      $region15: #{tpu_custom_call.1} parent=5 // pred_region
        // Predicated region
        $region17: #{tpu_custom_call.1} parent=15 // pred_check
          %p84 = pneg %p33
        $region18: #{tpu_custom_call.1} parent=15 // pred_check_branch
          %86 = sbr.rel (%p84) target = $region20
        $region19: #{tpu_custom_call.1} parent=15 // pred_region
          %s87 = sand.u32 %s23, 1
          %s88 = scalar_lea.sflag [#allocation6], %s87
          %s89 = sand.u32 %s23, 1
          %s90 = smul.addr %s89, 64
          %s91 = scalar_lea.vmem [#allocation5], %s90
          %s92 = smul.u32 4, %s13
          %s94 = ssub.s32 1024, 1024
          %95 = vsyncadd %s88, %s94
          %s96 = smul.addr %s92, 2
          %s97 = smul.addr %s96, 128
          %s98 = scalar_lea.hbm %s0, %s97
          %s99 = sshll.u32 %s91, 4
          %s100 = int_to_ptr.vmem [resolvable:$true] %s99
          %105 = dma.hbm_to_vmem [thread:$0]  %s98, 1024, %s100, %s88, 128, 128, 8
        $region20: #{tpu_custom_call.1} parent=15 // pred_fallthru
          _
      $region16: #{tpu_custom_call.1} parent=5 // pred_fallthru
        _
      %p106 = scmp.le.s32.totalorder 1, %s13
      %p107 = scmp.lt.s32.totalorder %s13, 3
      %p108 = pnand %p106, %p107
      %p109 = pneg %p108
      // Predicated region
      $region21: #{tpu_custom_call.1} parent=5 // pred_check
        _
      $region22: #{tpu_custom_call.1} parent=5 // pred_check_branch
        %111 = sbr.rel (%p108) target = $region24
      $region23: #{tpu_custom_call.1} parent=5 // pred_region
        %s112 = ssub.s32 %s13, 1
        %s113 = sand.u32 %s26, 1
        %s114 = scalar_lea.sflag [#allocation6], %s113
        %s115 = sand.u32 %s26, 1
        %s116 = smul.addr %s115, 64
        %s117 = scalar_lea.vmem [#allocation5], %s116
        // Predicated region
        $region25: #{tpu_custom_call.1} parent=23 // pred_check
          %p118 = pneg %p39
        $region26: #{tpu_custom_call.1} parent=23 // pred_check_branch
          %120 = sbr.rel (%p118) target = $region28
        $region27: #{tpu_custom_call.1} parent=23 // pred_region
          %121 = dma.done %s114, 1024
        $region28: #{tpu_custom_call.1} parent=23 // pred_fallthru
          _
        %s122 = sand.u32 %s26, 1
        %s123 = scalar_lea.sflag [#allocation6], %s122
        %s124 = sand.u32 %s26, 1
        %s125 = smul.addr %s124, 64
        %s126 = scalar_lea.vmem [#allocation5], %s125
        %p127 = pneg %p39
        %p128 = pneg %p36
        %p129 = pneg %p65
        %p130 = pneg %p62
        %s131 = sand.u32 %s52, 1
        %s132 = scalar_lea.sflag [#allocation7], %s131
        %s133 = sand.u32 %s52, 1
        %s134 = smul.addr %s133, 32
        %s135 = scalar_lea.vmem [#allocation8], %s134
        %s136 = smul.u32 4, %s18
        %s137 = smul.u32 4, %s18
        %s138 = scalar_lea.vmem %s117, 1 [#allocation5]
        %v139 = vld [vmem:[%s138] ss:$2 sm:$0x7f]
        %s140 = scalar_lea.vmem %s117, 17 [#allocation5]
        %v141 = vld [vmem:[%s140] ss:$2 sm:$0x7f]
        %s142 = scalar_lea.vmem %s117, 33 [#allocation5]
        %v143 = vld [vmem:[%s142] ss:$2 sm:$0x7f]
        %s144 = scalar_lea.vmem %s117, 49 [#allocation5]
        %v145 = vld [vmem:[%s144] ss:$2 sm:$0x7f]
        %vm146 = vcmask 122880
        %147 = vst.msk [vmem:[#allocation2] sm:$0x1] %vm146, -inf
        %148 = vst.msk [vmem:[#allocation2 + $0x8] sm:$0x1] %vm146, -inf
        %149 = vst.msk [vmem:[#allocation2 + $0x10] sm:$0x1] %vm146, -inf
        %150 = vst.msk [vmem:[#allocation2 + $0x18] sm:$0x1] %vm146, -inf
        %vm151 = vcmask 129024
        %152 = vst.msk [vmem:[#allocation2 + $0x1] sm:$0x7f] %vm151, %v139
        %153 = vst.msk [vmem:[#allocation2 + $0x9] sm:$0x7f] %vm151, %v141
        %154 = vst.msk [vmem:[#allocation2 + $0x11] sm:$0x7f] %vm151, %v143
        %155 = vst.msk [vmem:[#allocation2 + $0x19] sm:$0x7f] %vm151, %v145
        %v156 = vld [vmem:[%s117] ss:$2 sm:$0xff]
        %s157 = scalar_lea.vmem %s117, 16 [#allocation5]
        %v158 = vld [vmem:[%s157] ss:$2 sm:$0xff]
        %s159 = scalar_lea.vmem %s117, 32 [#allocation5]
        %v160 = vld [vmem:[%s159] ss:$2 sm:$0xff]
        %s161 = scalar_lea.vmem %s117, 48 [#allocation5]
        %v162 = vld [vmem:[%s161] ss:$2 sm:$0xff]
        %v163 = vld [vmem:[#allocation2] sm:$0xff]
        %v164 = vld [vmem:[#allocation2 + $0x8] sm:$0xff]
        %v165 = vld [vmem:[#allocation2 + $0x10] sm:$0xff]
        %v166 = vld [vmem:[#allocation2 + $0x18] sm:$0xff]
        %v167 = vmax.f32 %v163, %v156
        %v168 = vmax.f32 %v164, %v158
        %v169 = vmax.f32 %v165, %v160
        %v170 = vmax.f32 %v166, %v162
        %vm171 = vcmask 130048
        %172 = vst.msk [vmem:[#allocation2] sm:$0xff] %vm171, %v167
        %173 = vst.msk [vmem:[#allocation2 + $0x8] sm:$0xff] %vm171, %v168
        %174 = vst.msk [vmem:[#allocation2 + $0x10] sm:$0xff] %vm171, %v169
        %175 = vst.msk [vmem:[#allocation2 + $0x18] sm:$0xff] %vm171, %v170
        %v176 = vld [vmem:[%s138] ss:$2 sm:$0xff]
        %v177 = vld [vmem:[%s140] ss:$2 sm:$0xff]
        %v178 = vld [vmem:[%s142] ss:$2 sm:$0xff]
        %v179 = vld [vmem:[%s144] ss:$2 sm:$0xff]
        %v180 = vld [vmem:[#allocation2] sm:$0xff]
        %v181 = vld [vmem:[#allocation2 + $0x8] sm:$0xff]
        %v182 = vld [vmem:[#allocation2 + $0x10] sm:$0xff]
        %v183 = vld [vmem:[#allocation2 + $0x18] sm:$0xff]
        %v184 = vmax.f32 %v180, %v176
        %v185 = vmax.f32 %v181, %v177
        %v186 = vmax.f32 %v182, %v178
        %v187 = vmax.f32 %v183, %v179
        %188 = vst.msk [vmem:[#allocation2] sm:$0xff] %vm171, %v184
        %189 = vst.msk [vmem:[#allocation2 + $0x8] sm:$0xff] %vm171, %v185
        %190 = vst.msk [vmem:[#allocation2 + $0x10] sm:$0xff] %vm171, %v186
        %191 = vst.msk [vmem:[#allocation2 + $0x18] sm:$0xff] %vm171, %v187
        %v192 = vld [vmem:[#allocation2] sm:$0x1]
        %v193 = vld [vmem:[#allocation2 + $0x8] sm:$0x1]
        %v194 = vld [vmem:[#allocation2 + $0x10] sm:$0x1]
        %v195 = vld [vmem:[#allocation2 + $0x18] sm:$0x1]
        %v200 = vrot.slane %v193, 7
        %vm201 = vcmask 1041409
        %v202 = vsel %vm201, %v200, %v192
        %v203 = vrot.slane %v194, 6
        %vm204 = vcmask 1042434
        %v205 = vsel %vm204, %v203, %v202
        %v206 = vrot.slane %v195, 5
        %vm207 = vcmask 1043459
        %v208 = vsel %vm207, %v206, %v205
        %210 = vxpose.xlu0.b32.start [1/16] %v208, 128
        %211 = vxpose.xlu0.b32.cont [2/16] 0.0, 128
        %212 = vxpose.xlu0.b32.cont [3/16] 0.0, 128
        %213 = vxpose.xlu0.b32.cont [4/16] 0.0, 128
        %214 = vxpose.xlu0.b32.cont [5/16] 0.0, 128
        %215 = vxpose.xlu0.b32.cont [6/16] 0.0, 128
        %216 = vxpose.xlu0.b32.cont [7/16] 0.0, 128
        %217 = vxpose.xlu0.b32.cont [8/16] 0.0, 128
        %218 = vxpose.xlu0.b32.cont [9/16] 0.0, 128
        %219 = vxpose.xlu0.b32.cont [10/16] 0.0, 128
        %220 = vxpose.xlu0.b32.cont [11/16] 0.0, 128
        %221 = vxpose.xlu0.b32.cont [12/16] 0.0, 128
        %222 = vxpose.xlu0.b32.cont [13/16] 0.0, 128
        %223 = vxpose.xlu0.b32.cont [14/16] 0.0, 128
        %224 = vxpose.xlu0.b32.cont [15/16] 0.0, 128
        %225 = vxpose.xlu0.b32.end [16/16] 0.0, 128
        %v226 = vpop.trf.xlu0
        %v227 = vpop.trf.xlu0
        %v228 = vpop.trf.xlu0
        %v229 = vpop.trf.xlu0
        %v230 = vpop.trf.xlu0
        %v231 = vpop.trf.xlu0
        %v232 = vpop.trf.xlu0
        %v233 = vpop.trf.xlu0
        %v234 = vpop.trf.xlu0
        %v235 = vpop.trf.xlu0
        %v236 = vpop.trf.xlu0
        %v237 = vpop.trf.xlu0
        %v238 = vpop.trf.xlu0
        %v239 = vpop.trf.xlu0
        %v240 = vpop.trf.xlu0
        %v241 = vpop.trf.xlu0
        %vm242 = vcmask 31744
        %243 = vst.msk [vmem:[#allocation3] sm:$0xff] %vm242, %v226
        %244 = vst.msk [vmem:[#allocation3 + $0x8] sm:$0xff] %vm242, %v227
        %v245 = vld [vmem:[#allocation2 + $0x1] sm:$0x1]
        %v246 = vld [vmem:[#allocation2 + $0x9] sm:$0x1]
        %v247 = vld [vmem:[#allocation2 + $0x11] sm:$0x1]
        %v248 = vld [vmem:[#allocation2 + $0x19] sm:$0x1]
        %v253 = vrot.slane %v246, 7
        %v254 = vsel %vm201, %v253, %v245
        %v255 = vrot.slane %v247, 6
        %v256 = vsel %vm204, %v255, %v254
        %v257 = vrot.slane %v248, 5
        %v258 = vsel %vm207, %v257, %v256
        %260 = vxpose.xlu0.b32.start [1/16] %v258, 128
        %261 = vxpose.xlu0.b32.cont [2/16] 0.0, 128
        %262 = vxpose.xlu0.b32.cont [3/16] 0.0, 128
        %263 = vxpose.xlu0.b32.cont [4/16] 0.0, 128
        %264 = vxpose.xlu0.b32.cont [5/16] 0.0, 128
        %265 = vxpose.xlu0.b32.cont [6/16] 0.0, 128
        %266 = vxpose.xlu0.b32.cont [7/16] 0.0, 128
        %267 = vxpose.xlu0.b32.cont [8/16] 0.0, 128
        %268 = vxpose.xlu0.b32.cont [9/16] 0.0, 128
        %269 = vxpose.xlu0.b32.cont [10/16] 0.0, 128
        %270 = vxpose.xlu0.b32.cont [11/16] 0.0, 128
        %271 = vxpose.xlu0.b32.cont [12/16] 0.0, 128
        %272 = vxpose.xlu0.b32.cont [13/16] 0.0, 128
        %273 = vxpose.xlu0.b32.cont [14/16] 0.0, 128
        %274 = vxpose.xlu0.b32.cont [15/16] 0.0, 128
        %275 = vxpose.xlu0.b32.end [16/16] 0.0, 128
        %v276 = vpop.trf.xlu0
        %v277 = vpop.trf.xlu0
        %v278 = vpop.trf.xlu0
        %v279 = vpop.trf.xlu0
        %v280 = vpop.trf.xlu0
        %v281 = vpop.trf.xlu0
        %v282 = vpop.trf.xlu0
        %v283 = vpop.trf.xlu0
        %v284 = vpop.trf.xlu0
        %v285 = vpop.trf.xlu0
        %v286 = vpop.trf.xlu0
        %v287 = vpop.trf.xlu0
        %v288 = vpop.trf.xlu0
        %v289 = vpop.trf.xlu0
        %v290 = vpop.trf.xlu0
        %v291 = vpop.trf.xlu0
        %s292 = scalar_lea.vmem [#allocation3], 16
        %293 = vst.msk [vmem:[%s292] sm:$0xff] %vm242, %v276
        %294 = vst.msk [vmem:[%s292 + $0x8] sm:$0xff] %vm242, %v277
        %v295 = vld [vmem:[#allocation2 + $0x2] sm:$0x1]
        %v296 = vld [vmem:[#allocation2 + $0xa] sm:$0x1]
        %v297 = vld [vmem:[#allocation2 + $0x12] sm:$0x1]
        %v298 = vld [vmem:[#allocation2 + $0x1a] sm:$0x1]
        %v303 = vrot.slane %v296, 7
        %v304 = vsel %vm201, %v303, %v295
        %v305 = vrot.slane %v297, 6
        %v306 = vsel %vm204, %v305, %v304
        %v307 = vrot.slane %v298, 5
        %v308 = vsel %vm207, %v307, %v306
        %310 = vxpose.xlu0.b32.start [1/16] %v308, 128
        %311 = vxpose.xlu0.b32.cont [2/16] 0.0, 128
        %312 = vxpose.xlu0.b32.cont [3/16] 0.0, 128
        %313 = vxpose.xlu0.b32.cont [4/16] 0.0, 128
        %314 = vxpose.xlu0.b32.cont [5/16] 0.0, 128
        %315 = vxpose.xlu0.b32.cont [6/16] 0.0, 128
        %316 = vxpose.xlu0.b32.cont [7/16] 0.0, 128
        %317 = vxpose.xlu0.b32.cont [8/16] 0.0, 128
        %318 = vxpose.xlu0.b32.cont [9/16] 0.0, 128
        %319 = vxpose.xlu0.b32.cont [10/16] 0.0, 128
        %320 = vxpose.xlu0.b32.cont [11/16] 0.0, 128
        %321 = vxpose.xlu0.b32.cont [12/16] 0.0, 128
        %322 = vxpose.xlu0.b32.cont [13/16] 0.0, 128
        %323 = vxpose.xlu0.b32.cont [14/16] 0.0, 128
        %324 = vxpose.xlu0.b32.cont [15/16] 0.0, 128
        %325 = vxpose.xlu0.b32.end [16/16] 0.0, 128
        %v326 = vpop.trf.xlu0
        %v327 = vpop.trf.xlu0
        %v328 = vpop.trf.xlu0
        %v329 = vpop.trf.xlu0
        %v330 = vpop.trf.xlu0
        %v331 = vpop.trf.xlu0
        %v332 = vpop.trf.xlu0
        %v333 = vpop.trf.xlu0
        %v334 = vpop.trf.xlu0
        %v335 = vpop.trf.xlu0
        %v336 = vpop.trf.xlu0
        %v337 = vpop.trf.xlu0
        %v338 = vpop.trf.xlu0
        %v339 = vpop.trf.xlu0
        %v340 = vpop.trf.xlu0
        %v341 = vpop.trf.xlu0
        %s342 = scalar_lea.vmem [#allocation3], 32
        %343 = vst.msk [vmem:[%s342] sm:$0xff] %vm242, %v326
        %344 = vst.msk [vmem:[%s342 + $0x8] sm:$0xff] %vm242, %v327
        %v345 = vld [vmem:[#allocation2 + $0x3] sm:$0x1]
        %v346 = vld [vmem:[#allocation2 + $0xb] sm:$0x1]
        %v347 = vld [vmem:[#allocation2 + $0x13] sm:$0x1]
        %v348 = vld [vmem:[#allocation2 + $0x1b] sm:$0x1]
        %v353 = vrot.slane %v346, 7
        %v354 = vsel %vm201, %v353, %v345
        %v355 = vrot.slane %v347, 6
        %v356 = vsel %vm204, %v355, %v354
        %v357 = vrot.slane %v348, 5
        %v358 = vsel %vm207, %v357, %v356
        %360 = vxpose.xlu0.b32.start [1/16] %v358, 128
        %361 = vxpose.xlu0.b32.cont [2/16] 0.0, 128
        %362 = vxpose.xlu0.b32.cont [3/16] 0.0, 128
        %363 = vxpose.xlu0.b32.cont [4/16] 0.0, 128
        %364 = vxpose.xlu0.b32.cont [5/16] 0.0, 128
        %365 = vxpose.xlu0.b32.cont [6/16] 0.0, 128
        %366 = vxpose.xlu0.b32.cont [7/16] 0.0, 128
        %367 = vxpose.xlu0.b32.cont [8/16] 0.0, 128
        %368 = vxpose.xlu0.b32.cont [9/16] 0.0, 128
        %369 = vxpose.xlu0.b32.cont [10/16] 0.0, 128
        %370 = vxpose.xlu0.b32.cont [11/16] 0.0, 128
        %371 = vxpose.xlu0.b32.cont [12/16] 0.0, 128
        %372 = vxpose.xlu0.b32.cont [13/16] 0.0, 128
        %373 = vxpose.xlu0.b32.cont [14/16] 0.0, 128
        %374 = vxpose.xlu0.b32.cont [15/16] 0.0, 128
        %375 = vxpose.xlu0.b32.end [16/16] 0.0, 128
        %v376 = vpop.trf.xlu0
        %v377 = vpop.trf.xlu0
        %v378 = vpop.trf.xlu0
        %v379 = vpop.trf.xlu0
        %v380 = vpop.trf.xlu0
        %v381 = vpop.trf.xlu0
        %v382 = vpop.trf.xlu0
        %v383 = vpop.trf.xlu0
        %v384 = vpop.trf.xlu0
        %v385 = vpop.trf.xlu0
        %v386 = vpop.trf.xlu0
        %v387 = vpop.trf.xlu0
        %v388 = vpop.trf.xlu0
        %v389 = vpop.trf.xlu0
        %v390 = vpop.trf.xlu0
        %v391 = vpop.trf.xlu0
        %s392 = scalar_lea.vmem [#allocation3], 48
        %393 = vst.msk [vmem:[%s392] sm:$0xff] %vm242, %v376
        %394 = vst.msk [vmem:[%s392 + $0x8] sm:$0xff] %vm242, %v377
        %v395 = vld [vmem:[#allocation2 + $0x4] sm:$0x1]
        %v396 = vld [vmem:[#allocation2 + $0xc] sm:$0x1]
        %v397 = vld [vmem:[#allocation2 + $0x14] sm:$0x1]
        %v398 = vld [vmem:[#allocation2 + $0x1c] sm:$0x1]
        %v403 = vrot.slane %v396, 7
        %v404 = vsel %vm201, %v403, %v395
        %v405 = vrot.slane %v397, 6
        %v406 = vsel %vm204, %v405, %v404
        %v407 = vrot.slane %v398, 5
        %v408 = vsel %vm207, %v407, %v406
        %410 = vxpose.xlu0.b32.start [1/16] %v408, 128
        %411 = vxpose.xlu0.b32.cont [2/16] 0.0, 128
        %412 = vxpose.xlu0.b32.cont [3/16] 0.0, 128
        %413 = vxpose.xlu0.b32.cont [4/16] 0.0, 128
        %414 = vxpose.xlu0.b32.cont [5/16] 0.0, 128
        %415 = vxpose.xlu0.b32.cont [6/16] 0.0, 128
        %416 = vxpose.xlu0.b32.cont [7/16] 0.0, 128
        %417 = vxpose.xlu0.b32.cont [8/16] 0.0, 128
        %418 = vxpose.xlu0.b32.cont [9/16] 0.0, 128
        %419 = vxpose.xlu0.b32.cont [10/16] 0.0, 128
        %420 = vxpose.xlu0.b32.cont [11/16] 0.0, 128
        %421 = vxpose.xlu0.b32.cont [12/16] 0.0, 128
        %422 = vxpose.xlu0.b32.cont [13/16] 0.0, 128
        %423 = vxpose.xlu0.b32.cont [14/16] 0.0, 128
        %424 = vxpose.xlu0.b32.cont [15/16] 0.0, 128
        %425 = vxpose.xlu0.b32.end [16/16] 0.0, 128
        %v426 = vpop.trf.xlu0
        %v427 = vpop.trf.xlu0
        %v428 = vpop.trf.xlu0
        %v429 = vpop.trf.xlu0
        %v430 = vpop.trf.xlu0
        %v431 = vpop.trf.xlu0
        %v432 = vpop.trf.xlu0
        %v433 = vpop.trf.xlu0
        %v434 = vpop.trf.xlu0
        %v435 = vpop.trf.xlu0
        %v436 = vpop.trf.xlu0
        %v437 = vpop.trf.xlu0
        %v438 = vpop.trf.xlu0
        %v439 = vpop.trf.xlu0
        %v440 = vpop.trf.xlu0
        %v441 = vpop.trf.xlu0
        %s442 = scalar_lea.vmem [#allocation3], 64
        %443 = vst.msk [vmem:[%s442] sm:$0xff] %vm242, %v426
        %444 = vst.msk [vmem:[%s442 + $0x8] sm:$0xff] %vm242, %v427
        %v445 = vld [vmem:[#allocation2 + $0x5] sm:$0x1]
        %v446 = vld [vmem:[#allocation2 + $0xd] sm:$0x1]
        %v447 = vld [vmem:[#allocation2 + $0x15] sm:$0x1]
        %v448 = vld [vmem:[#allocation2 + $0x1d] sm:$0x1]
        %v453 = vrot.slane %v446, 7
        %v454 = vsel %vm201, %v453, %v445
        %v455 = vrot.slane %v447, 6
        %v456 = vsel %vm204, %v455, %v454
        %v457 = vrot.slane %v448, 5
        %v458 = vsel %vm207, %v457, %v456
        %460 = vxpose.xlu0.b32.start [1/16] %v458, 128
        %461 = vxpose.xlu0.b32.cont [2/16] 0.0, 128
        %462 = vxpose.xlu0.b32.cont [3/16] 0.0, 128
        %463 = vxpose.xlu0.b32.cont [4/16] 0.0, 128
        %464 = vxpose.xlu0.b32.cont [5/16] 0.0, 128
        %465 = vxpose.xlu0.b32.cont [6/16] 0.0, 128
        %466 = vxpose.xlu0.b32.cont [7/16] 0.0, 128
        %467 = vxpose.xlu0.b32.cont [8/16] 0.0, 128
        %468 = vxpose.xlu0.b32.cont [9/16] 0.0, 128
        %469 = vxpose.xlu0.b32.cont [10/16] 0.0, 128
        %470 = vxpose.xlu0.b32.cont [11/16] 0.0, 128
        %471 = vxpose.xlu0.b32.cont [12/16] 0.0, 128
        %472 = vxpose.xlu0.b32.cont [13/16] 0.0, 128
        %473 = vxpose.xlu0.b32.cont [14/16] 0.0, 128
        %474 = vxpose.xlu0.b32.cont [15/16] 0.0, 128
        %475 = vxpose.xlu0.b32.end [16/16] 0.0, 128
        %v476 = vpop.trf.xlu0
        %v477 = vpop.trf.xlu0
        %v478 = vpop.trf.xlu0
        %v479 = vpop.trf.xlu0
        %v480 = vpop.trf.xlu0
        %v481 = vpop.trf.xlu0
        %v482 = vpop.trf.xlu0
        %v483 = vpop.trf.xlu0
        %v484 = vpop.trf.xlu0
        %v485 = vpop.trf.xlu0
        %v486 = vpop.trf.xlu0
        %v487 = vpop.trf.xlu0
        %v488 = vpop.trf.xlu0
        %v489 = vpop.trf.xlu0
        %v490 = vpop.trf.xlu0
        %v491 = vpop.trf.xlu0
        %s492 = scalar_lea.vmem [#allocation3], 80
        %493 = vst.msk [vmem:[%s492] sm:$0xff] %vm242, %v476
        %494 = vst.msk [vmem:[%s492 + $0x8] sm:$0xff] %vm242, %v477
        %v495 = vld [vmem:[#allocation2 + $0x6] sm:$0x1]
        %v496 = vld [vmem:[#allocation2 + $0xe] sm:$0x1]
        %v497 = vld [vmem:[#allocation2 + $0x16] sm:$0x1]
        %v498 = vld [vmem:[#allocation2 + $0x1e] sm:$0x1]
        %v503 = vrot.slane %v496, 7
        %v504 = vsel %vm201, %v503, %v495
        %v505 = vrot.slane %v497, 6
        %v506 = vsel %vm204, %v505, %v504
        %v507 = vrot.slane %v498, 5
        %v508 = vsel %vm207, %v507, %v506
        %510 = vxpose.xlu0.b32.start [1/16] %v508, 128
        %511 = vxpose.xlu0.b32.cont [2/16] 0.0, 128
        %512 = vxpose.xlu0.b32.cont [3/16] 0.0, 128
        %513 = vxpose.xlu0.b32.cont [4/16] 0.0, 128
        %514 = vxpose.xlu0.b32.cont [5/16] 0.0, 128
        %515 = vxpose.xlu0.b32.cont [6/16] 0.0, 128
        %516 = vxpose.xlu0.b32.cont [7/16] 0.0, 128
        %517 = vxpose.xlu0.b32.cont [8/16] 0.0, 128
        %518 = vxpose.xlu0.b32.cont [9/16] 0.0, 128
        %519 = vxpose.xlu0.b32.cont [10/16] 0.0, 128
        %520 = vxpose.xlu0.b32.cont [11/16] 0.0, 128
        %521 = vxpose.xlu0.b32.cont [12/16] 0.0, 128
        %522 = vxpose.xlu0.b32.cont [13/16] 0.0, 128
        %523 = vxpose.xlu0.b32.cont [14/16] 0.0, 128
        %524 = vxpose.xlu0.b32.cont [15/16] 0.0, 128
        %525 = vxpose.xlu0.b32.end [16/16] 0.0, 128
        %v526 = vpop.trf.xlu0
        %v527 = vpop.trf.xlu0
        %v528 = vpop.trf.xlu0
        %v529 = vpop.trf.xlu0
        %v530 = vpop.trf.xlu0
        %v531 = vpop.trf.xlu0
        %v532 = vpop.trf.xlu0
        %v533 = vpop.trf.xlu0
        %v534 = vpop.trf.xlu0
        %v535 = vpop.trf.xlu0
        %v536 = vpop.trf.xlu0
        %v537 = vpop.trf.xlu0
        %v538 = vpop.trf.xlu0
        %v539 = vpop.trf.xlu0
        %v540 = vpop.trf.xlu0
        %v541 = vpop.trf.xlu0
        %s542 = scalar_lea.vmem [#allocation3], 96
        %543 = vst.msk [vmem:[%s542] sm:$0xff] %vm242, %v526
        %544 = vst.msk [vmem:[%s542 + $0x8] sm:$0xff] %vm242, %v527
        %v545 = vld [vmem:[#allocation2 + $0x7] sm:$0x1]
        %v546 = vld [vmem:[#allocation2 + $0xf] sm:$0x1]
        %v547 = vld [vmem:[#allocation2 + $0x17] sm:$0x1]
        %v548 = vld [vmem:[#allocation2 + $0x1f] sm:$0x1]
        %v553 = vrot.slane %v546, 7
        %v554 = vsel %vm201, %v553, %v545
        %v555 = vrot.slane %v547, 6
        %v556 = vsel %vm204, %v555, %v554
        %v557 = vrot.slane %v548, 5
        %v558 = vsel %vm207, %v557, %v556
        %560 = vxpose.xlu0.b32.start [1/16] %v558, 128
        %561 = vxpose.xlu0.b32.cont [2/16] 0.0, 128
        %562 = vxpose.xlu0.b32.cont [3/16] 0.0, 128
        %563 = vxpose.xlu0.b32.cont [4/16] 0.0, 128
        %564 = vxpose.xlu0.b32.cont [5/16] 0.0, 128
        %565 = vxpose.xlu0.b32.cont [6/16] 0.0, 128
        %566 = vxpose.xlu0.b32.cont [7/16] 0.0, 128
        %567 = vxpose.xlu0.b32.cont [8/16] 0.0, 128
        %568 = vxpose.xlu0.b32.cont [9/16] 0.0, 128
        %569 = vxpose.xlu0.b32.cont [10/16] 0.0, 128
        %570 = vxpose.xlu0.b32.cont [11/16] 0.0, 128
        %571 = vxpose.xlu0.b32.cont [12/16] 0.0, 128
        %572 = vxpose.xlu0.b32.cont [13/16] 0.0, 128
        %573 = vxpose.xlu0.b32.cont [14/16] 0.0, 128
        %574 = vxpose.xlu0.b32.cont [15/16] 0.0, 128
        %575 = vxpose.xlu0.b32.end [16/16] 0.0, 128
        %v576 = vpop.trf.xlu0
        %v577 = vpop.trf.xlu0
        %v578 = vpop.trf.xlu0
        %v579 = vpop.trf.xlu0
        %v580 = vpop.trf.xlu0
        %v581 = vpop.trf.xlu0
        %v582 = vpop.trf.xlu0
        %v583 = vpop.trf.xlu0
        %v584 = vpop.trf.xlu0
        %v585 = vpop.trf.xlu0
        %v586 = vpop.trf.xlu0
        %v587 = vpop.trf.xlu0
        %v588 = vpop.trf.xlu0
        %v589 = vpop.trf.xlu0
        %v590 = vpop.trf.xlu0
        %v591 = vpop.trf.xlu0
        %s592 = scalar_lea.vmem [#allocation3], 112
        %593 = vst.msk [vmem:[%s592] sm:$0xff] %vm242, %v576
        %594 = vst.msk [vmem:[%s592 + $0x8] sm:$0xff] %vm242, %v577
        %s595 = scalar_lea.vmem [#allocation3], 1
        %v596 = vld [vmem:[%s595] ss:$2 sm:$0x7f]
        %s597 = scalar_lea.vmem [#allocation3], 17
        %v598 = vld [vmem:[%s597] ss:$2 sm:$0x7f]
        %s599 = scalar_lea.vmem [#allocation3], 33
        %v600 = vld [vmem:[%s599] ss:$2 sm:$0x7f]
        %s601 = scalar_lea.vmem [#allocation3], 49
        %v602 = vld [vmem:[%s601] ss:$2 sm:$0x7f]
        %s603 = scalar_lea.vmem [#allocation3], 65
        %v604 = vld [vmem:[%s603] ss:$2 sm:$0x7f]
        %s605 = scalar_lea.vmem [#allocation3], 81
        %v606 = vld [vmem:[%s605] ss:$2 sm:$0x7f]
        %s607 = scalar_lea.vmem [#allocation3], 97
        %v608 = vld [vmem:[%s607] ss:$2 sm:$0x7f]
        %s609 = scalar_lea.vmem [#allocation3], 113
        %v610 = vld [vmem:[%s609] ss:$2 sm:$0x7f]
        %vm611 = vcmask 24576
        %612 = vst.msk [vmem:[#allocation4] sm:$0x1] %vm611, -inf
        %613 = vst.msk [vmem:[#allocation4 + $0x8] sm:$0x1] %vm611, -inf
        %614 = vst.msk [vmem:[#allocation4 + $0x10] sm:$0x1] %vm611, -inf
        %615 = vst.msk [vmem:[#allocation4 + $0x18] sm:$0x1] %vm611, -inf
        %616 = vst.msk [vmem:[#allocation4 + $0x20] sm:$0x1] %vm611, -inf
        %617 = vst.msk [vmem:[#allocation4 + $0x28] sm:$0x1] %vm611, -inf
        %618 = vst.msk [vmem:[#allocation4 + $0x30] sm:$0x1] %vm611, -inf
        %619 = vst.msk [vmem:[#allocation4 + $0x38] sm:$0x1] %vm611, -inf
        %vm620 = vcmask 30720
        %621 = vst.msk [vmem:[#allocation4 + $0x1] sm:$0x7f] %vm620, %v596
        %622 = vst.msk [vmem:[#allocation4 + $0x9] sm:$0x7f] %vm620, %v598
        %623 = vst.msk [vmem:[#allocation4 + $0x11] sm:$0x7f] %vm620, %v600
        %624 = vst.msk [vmem:[#allocation4 + $0x19] sm:$0x7f] %vm620, %v602
        %625 = vst.msk [vmem:[#allocation4 + $0x21] sm:$0x7f] %vm620, %v604
        %626 = vst.msk [vmem:[#allocation4 + $0x29] sm:$0x7f] %vm620, %v606
        %627 = vst.msk [vmem:[#allocation4 + $0x31] sm:$0x7f] %vm620, %v608
        %628 = vst.msk [vmem:[#allocation4 + $0x39] sm:$0x7f] %vm620, %v610
        %v629 = vld [vmem:[#allocation3] ss:$2 sm:$0xff]
        %s630 = scalar_lea.vmem [#allocation3], 16
        %v631 = vld [vmem:[%s630] ss:$2 sm:$0xff]
        %s632 = scalar_lea.vmem [#allocation3], 32
        %v633 = vld [vmem:[%s632] ss:$2 sm:$0xff]
        %s634 = scalar_lea.vmem [#allocation3], 48
        %v635 = vld [vmem:[%s634] ss:$2 sm:$0xff]
        %s636 = scalar_lea.vmem [#allocation3], 64
        %v637 = vld [vmem:[%s636] ss:$2 sm:$0xff]
        %s638 = scalar_lea.vmem [#allocation3], 80
        %v639 = vld [vmem:[%s638] ss:$2 sm:$0xff]
        %s640 = scalar_lea.vmem [#allocation3], 96
        %v641 = vld [vmem:[%s640] ss:$2 sm:$0xff]
        %s642 = scalar_lea.vmem [#allocation3], 112
        %v643 = vld [vmem:[%s642] ss:$2 sm:$0xff]
        %v644 = vld [vmem:[#allocation4] sm:$0xff]
        %v645 = vld [vmem:[#allocation4 + $0x8] sm:$0xff]
        %v646 = vld [vmem:[#allocation4 + $0x10] sm:$0xff]
        %v647 = vld [vmem:[#allocation4 + $0x18] sm:$0xff]
        %v648 = vld [vmem:[#allocation4 + $0x20] sm:$0xff]
        %v649 = vld [vmem:[#allocation4 + $0x28] sm:$0xff]
        %v650 = vld [vmem:[#allocation4 + $0x30] sm:$0xff]
        %v651 = vld [vmem:[#allocation4 + $0x38] sm:$0xff]
        %v652 = vmax.f32 %v644, %v629
        %v653 = vmax.f32 %v645, %v631
        %v654 = vmax.f32 %v646, %v633
        %v655 = vmax.f32 %v647, %v635
        %v656 = vmax.f32 %v648, %v637
        %v657 = vmax.f32 %v649, %v639
        %v658 = vmax.f32 %v650, %v641
        %v659 = vmax.f32 %v651, %v643
        %660 = vst.msk [vmem:[#allocation4] sm:$0xff] %vm242, %v652
        %661 = vst.msk [vmem:[#allocation4 + $0x8] sm:$0xff] %vm242, %v653
        %662 = vst.msk [vmem:[#allocation4 + $0x10] sm:$0xff] %vm242, %v654
        %663 = vst.msk [vmem:[#allocation4 + $0x18] sm:$0xff] %vm242, %v655
        %664 = vst.msk [vmem:[#allocation4 + $0x20] sm:$0xff] %vm242, %v656
        %665 = vst.msk [vmem:[#allocation4 + $0x28] sm:$0xff] %vm242, %v657
        %666 = vst.msk [vmem:[#allocation4 + $0x30] sm:$0xff] %vm242, %v658
        %667 = vst.msk [vmem:[#allocation4 + $0x38] sm:$0xff] %vm242, %v659
        %v668 = vld [vmem:[%s595] ss:$2 sm:$0xff]
        %v669 = vld [vmem:[%s597] ss:$2 sm:$0xff]
        %v670 = vld [vmem:[%s599] ss:$2 sm:$0xff]
        %v671 = vld [vmem:[%s601] ss:$2 sm:$0xff]
        %v672 = vld [vmem:[%s603] ss:$2 sm:$0xff]
        %v673 = vld [vmem:[%s605] ss:$2 sm:$0xff]
        %v674 = vld [vmem:[%s607] ss:$2 sm:$0xff]
        %v675 = vld [vmem:[%s609] ss:$2 sm:$0xff]
        %v676 = vld [vmem:[#allocation4] sm:$0xff]
        %v677 = vld [vmem:[#allocation4 + $0x8] sm:$0xff]
        %v678 = vld [vmem:[#allocation4 + $0x10] sm:$0xff]
        %v679 = vld [vmem:[#allocation4 + $0x18] sm:$0xff]
        %v680 = vld [vmem:[#allocation4 + $0x20] sm:$0xff]
        %v681 = vld [vmem:[#allocation4 + $0x28] sm:$0xff]
        %v682 = vld [vmem:[#allocation4 + $0x30] sm:$0xff]
        %v683 = vld [vmem:[#allocation4 + $0x38] sm:$0xff]
        %v684 = vmax.f32 %v676, %v668
        %v685 = vmax.f32 %v677, %v669
        %v686 = vmax.f32 %v678, %v670
        %v687 = vmax.f32 %v679, %v671
        %v688 = vmax.f32 %v680, %v672
        %v689 = vmax.f32 %v681, %v673
        %v690 = vmax.f32 %v682, %v674
        %v691 = vmax.f32 %v683, %v675
        %692 = vst.msk [vmem:[#allocation4] sm:$0xff] %vm242, %v684
        %693 = vst.msk [vmem:[#allocation4 + $0x8] sm:$0xff] %vm242, %v685
        %694 = vst.msk [vmem:[#allocation4 + $0x10] sm:$0xff] %vm242, %v686
        %695 = vst.msk [vmem:[#allocation4 + $0x18] sm:$0xff] %vm242, %v687
        %696 = vst.msk [vmem:[#allocation4 + $0x20] sm:$0xff] %vm242, %v688
        %697 = vst.msk [vmem:[#allocation4 + $0x28] sm:$0xff] %vm242, %v689
        %698 = vst.msk [vmem:[#allocation4 + $0x30] sm:$0xff] %vm242, %v690
        %699 = vst.msk [vmem:[#allocation4 + $0x38] sm:$0xff] %vm242, %v691
        %v700 = vld [vmem:[#allocation4] sm:$0xff]
        %701 = vxpose.xlu0.b32.start [1/16] %v700, 128
        %702 = vxpose.xlu0.b32.cont [2/16] 0.0, 128
        %703 = vxpose.xlu0.b32.cont [3/16] 0.0, 128
        %704 = vxpose.xlu0.b32.cont [4/16] 0.0, 128
        %705 = vxpose.xlu0.b32.cont [5/16] 0.0, 128
        %706 = vxpose.xlu0.b32.cont [6/16] 0.0, 128
        %707 = vxpose.xlu0.b32.cont [7/16] 0.0, 128
        %708 = vxpose.xlu0.b32.cont [8/16] 0.0, 128
        %709 = vxpose.xlu0.b32.cont [9/16] 0.0, 128
        %710 = vxpose.xlu0.b32.cont [10/16] 0.0, 128
        %711 = vxpose.xlu0.b32.cont [11/16] 0.0, 128
        %712 = vxpose.xlu0.b32.cont [12/16] 0.0, 128
        %713 = vxpose.xlu0.b32.cont [13/16] 0.0, 128
        %714 = vxpose.xlu0.b32.cont [14/16] 0.0, 128
        %715 = vxpose.xlu0.b32.cont [15/16] 0.0, 128
        %716 = vxpose.xlu0.b32.end [16/16] 0.0, 128
        %v717 = vpop.trf.xlu0
        %v718 = vpop.trf.xlu0
        %v719 = vpop.trf.xlu0
        %v720 = vpop.trf.xlu0
        %v721 = vpop.trf.xlu0
        %v722 = vpop.trf.xlu0
        %v723 = vpop.trf.xlu0
        %v724 = vpop.trf.xlu0
        %v725 = vpop.trf.xlu0
        %v726 = vpop.trf.xlu0
        %v727 = vpop.trf.xlu0
        %v728 = vpop.trf.xlu0
        %v729 = vpop.trf.xlu0
        %v730 = vpop.trf.xlu0
        %v731 = vpop.trf.xlu0
        %v732 = vpop.trf.xlu0
        %v735 = vunpack.c.l.s4 1966171168
        %v736 = vunpack.c.0.s8 %v735
        %v737 = vlaneseq
        %v738 = vshrl.u32 %v737, 7
        %v739 = vsub.s32 %v736, %v738
        %v740 = vrot.slane %v717, %v739
        %v741 = vcombine.high %v740, %v740
        %v743 = vunpack.c.l.s4 1966171168
        %v744 = vunpack.c.0.s8 %v743
        %v745 = vlaneseq
        %v746 = vshrl.u32 %v745, 7
        %v747 = vsub.s32 %v744, %v746
        %v748 = vrot.slane %v740, %v747
        %v750 = vunpack.c.l.s4 1966171168
        %v751 = vunpack.c.0.s8 %v750
        %v752 = vlaneseq
        %v753 = vshrl.u32 %v752, 7
        %v754 = vsub.s32 %v751, %v753
        %v755 = vrot.slane %v741, %v754
        %v756 = vcombine.high %v748, %v748
        %v757 = vcombine.high %v755, %v755
        %vm762 = vcmask 57344
        %763 = vst.msk [vmem:[%s135] sm:$0x1] %vm762, %v748
        %764 = vst.msk [vmem:[%s135 + $0x8] sm:$0x1] %vm762, %v755
        %765 = vst.msk [vmem:[%s135 + $0x10] sm:$0x1] %vm762, %v756
        %766 = vst.msk [vmem:[%s135 + $0x18] sm:$0x1] %vm762, %v757
        %s767 = scalar_lea.vmem [#allocation4], 8
        %v768 = vld [vmem:[%s767] sm:$0xff]
        %769 = vxpose.xlu0.b32.start [1/16] %v768, 128
        %770 = vxpose.xlu0.b32.cont [2/16] 0.0, 128
        %771 = vxpose.xlu0.b32.cont [3/16] 0.0, 128
        %772 = vxpose.xlu0.b32.cont [4/16] 0.0, 128
        %773 = vxpose.xlu0.b32.cont [5/16] 0.0, 128
        %774 = vxpose.xlu0.b32.cont [6/16] 0.0, 128
        %775 = vxpose.xlu0.b32.cont [7/16] 0.0, 128
        %776 = vxpose.xlu0.b32.cont [8/16] 0.0, 128
        %777 = vxpose.xlu0.b32.cont [9/16] 0.0, 128
        %778 = vxpose.xlu0.b32.cont [10/16] 0.0, 128
        %779 = vxpose.xlu0.b32.cont [11/16] 0.0, 128
        %780 = vxpose.xlu0.b32.cont [12/16] 0.0, 128
        %781 = vxpose.xlu0.b32.cont [13/16] 0.0, 128
        %782 = vxpose.xlu0.b32.cont [14/16] 0.0, 128
        %783 = vxpose.xlu0.b32.cont [15/16] 0.0, 128
        %784 = vxpose.xlu0.b32.end [16/16] 0.0, 128
        %v785 = vpop.trf.xlu0
        %v786 = vpop.trf.xlu0
        %v787 = vpop.trf.xlu0
        %v788 = vpop.trf.xlu0
        %v789 = vpop.trf.xlu0
        %v790 = vpop.trf.xlu0
        %v791 = vpop.trf.xlu0
        %v792 = vpop.trf.xlu0
        %v793 = vpop.trf.xlu0
        %v794 = vpop.trf.xlu0
        %v795 = vpop.trf.xlu0
        %v796 = vpop.trf.xlu0
        %v797 = vpop.trf.xlu0
        %v798 = vpop.trf.xlu0
        %v799 = vpop.trf.xlu0
        %v800 = vpop.trf.xlu0
        %v803 = vunpack.c.l.s4 1966171168
        %v804 = vunpack.c.0.s8 %v803
        %v805 = vlaneseq
        %v806 = vshrl.u32 %v805, 7
        %v807 = vsub.s32 %v804, %v806
        %v808 = vrot.slane %v785, %v807
        %v809 = vcombine.high %v808, %v808
        %v811 = vunpack.c.l.s4 1966171168
        %v812 = vunpack.c.0.s8 %v811
        %v813 = vlaneseq
        %v814 = vshrl.u32 %v813, 7
        %v815 = vsub.s32 %v812, %v814
        %v816 = vrot.slane %v808, %v815
        %v818 = vunpack.c.l.s4 1966171168
        %v819 = vunpack.c.0.s8 %v818
        %v820 = vlaneseq
        %v821 = vshrl.u32 %v820, 7
        %v822 = vsub.s32 %v819, %v821
        %v823 = vrot.slane %v809, %v822
        %v824 = vcombine.high %v816, %v816
        %v825 = vcombine.high %v823, %v823
        %830 = vst.msk [vmem:[%s135 + $0x1] sm:$0x1] %vm762, %v816
        %831 = vst.msk [vmem:[%s135 + $0x9] sm:$0x1] %vm762, %v823
        %832 = vst.msk [vmem:[%s135 + $0x11] sm:$0x1] %vm762, %v824
        %833 = vst.msk [vmem:[%s135 + $0x19] sm:$0x1] %vm762, %v825
        %s834 = scalar_lea.vmem [#allocation4], 16
        %v835 = vld [vmem:[%s834] sm:$0xff]
        %836 = vxpose.xlu0.b32.start [1/16] %v835, 128
        %837 = vxpose.xlu0.b32.cont [2/16] 0.0, 128
        %838 = vxpose.xlu0.b32.cont [3/16] 0.0, 128
        %839 = vxpose.xlu0.b32.cont [4/16] 0.0, 128
        %840 = vxpose.xlu0.b32.cont [5/16] 0.0, 128
        %841 = vxpose.xlu0.b32.cont [6/16] 0.0, 128
        %842 = vxpose.xlu0.b32.cont [7/16] 0.0, 128
        %843 = vxpose.xlu0.b32.cont [8/16] 0.0, 128
        %844 = vxpose.xlu0.b32.cont [9/16] 0.0, 128
        %845 = vxpose.xlu0.b32.cont [10/16] 0.0, 128
        %846 = vxpose.xlu0.b32.cont [11/16] 0.0, 128
        %847 = vxpose.xlu0.b32.cont [12/16] 0.0, 128
        %848 = vxpose.xlu0.b32.cont [13/16] 0.0, 128
        %849 = vxpose.xlu0.b32.cont [14/16] 0.0, 128
        %850 = vxpose.xlu0.b32.cont [15/16] 0.0, 128
        %851 = vxpose.xlu0.b32.end [16/16] 0.0, 128
        %v852 = vpop.trf.xlu0
        %v853 = vpop.trf.xlu0
        %v854 = vpop.trf.xlu0
        %v855 = vpop.trf.xlu0
        %v856 = vpop.trf.xlu0
        %v857 = vpop.trf.xlu0
        %v858 = vpop.trf.xlu0
        %v859 = vpop.trf.xlu0
        %v860 = vpop.trf.xlu0
        %v861 = vpop.trf.xlu0
        %v862 = vpop.trf.xlu0
        %v863 = vpop.trf.xlu0
        %v864 = vpop.trf.xlu0
        %v865 = vpop.trf.xlu0
        %v866 = vpop.trf.xlu0
        %v867 = vpop.trf.xlu0
        %v870 = vunpack.c.l.s4 1966171168
        %v871 = vunpack.c.0.s8 %v870
        %v872 = vlaneseq
        %v873 = vshrl.u32 %v872, 7
        %v874 = vsub.s32 %v871, %v873
        %v875 = vrot.slane %v852, %v874
        %v876 = vcombine.high %v875, %v875
        %v878 = vunpack.c.l.s4 1966171168
        %v879 = vunpack.c.0.s8 %v878
        %v880 = vlaneseq
        %v881 = vshrl.u32 %v880, 7
        %v882 = vsub.s32 %v879, %v881
        %v883 = vrot.slane %v875, %v882
        %v885 = vunpack.c.l.s4 1966171168
        %v886 = vunpack.c.0.s8 %v885
        %v887 = vlaneseq
        %v888 = vshrl.u32 %v887, 7
        %v889 = vsub.s32 %v886, %v888
        %v890 = vrot.slane %v876, %v889
        %v891 = vcombine.high %v883, %v883
        %v892 = vcombine.high %v890, %v890
        %897 = vst.msk [vmem:[%s135 + $0x2] sm:$0x1] %vm762, %v883
        %898 = vst.msk [vmem:[%s135 + $0xa] sm:$0x1] %vm762, %v890
        %899 = vst.msk [vmem:[%s135 + $0x12] sm:$0x1] %vm762, %v891
        %900 = vst.msk [vmem:[%s135 + $0x1a] sm:$0x1] %vm762, %v892
        %s901 = scalar_lea.vmem [#allocation4], 24
        %v902 = vld [vmem:[%s901] sm:$0xff]
        %903 = vxpose.xlu0.b32.start [1/16] %v902, 128
        %904 = vxpose.xlu0.b32.cont [2/16] 0.0, 128
        %905 = vxpose.xlu0.b32.cont [3/16] 0.0, 128
        %906 = vxpose.xlu0.b32.cont [4/16] 0.0, 128
        %907 = vxpose.xlu0.b32.cont [5/16] 0.0, 128
        %908 = vxpose.xlu0.b32.cont [6/16] 0.0, 128
        %909 = vxpose.xlu0.b32.cont [7/16] 0.0, 128
        %910 = vxpose.xlu0.b32.cont [8/16] 0.0, 128
        %911 = vxpose.xlu0.b32.cont [9/16] 0.0, 128
        %912 = vxpose.xlu0.b32.cont [10/16] 0.0, 128
        %913 = vxpose.xlu0.b32.cont [11/16] 0.0, 128
        %914 = vxpose.xlu0.b32.cont [12/16] 0.0, 128
        %915 = vxpose.xlu0.b32.cont [13/16] 0.0, 128
        %916 = vxpose.xlu0.b32.cont [14/16] 0.0, 128
        %917 = vxpose.xlu0.b32.cont [15/16] 0.0, 128
        %918 = vxpose.xlu0.b32.end [16/16] 0.0, 128
        %v919 = vpop.trf.xlu0
        %v920 = vpop.trf.xlu0
        %v921 = vpop.trf.xlu0
        %v922 = vpop.trf.xlu0
        %v923 = vpop.trf.xlu0
        %v924 = vpop.trf.xlu0
        %v925 = vpop.trf.xlu0
        %v926 = vpop.trf.xlu0
        %v927 = vpop.trf.xlu0
        %v928 = vpop.trf.xlu0
        %v929 = vpop.trf.xlu0
        %v930 = vpop.trf.xlu0
        %v931 = vpop.trf.xlu0
        %v932 = vpop.trf.xlu0
        %v933 = vpop.trf.xlu0
        %v934 = vpop.trf.xlu0
        %v937 = vunpack.c.l.s4 1966171168
        %v938 = vunpack.c.0.s8 %v937
        %v939 = vlaneseq
        %v940 = vshrl.u32 %v939, 7
        %v941 = vsub.s32 %v938, %v940
        %v942 = vrot.slane %v919, %v941
        %v943 = vcombine.high %v942, %v942
        %v945 = vunpack.c.l.s4 1966171168
        %v946 = vunpack.c.0.s8 %v945
        %v947 = vlaneseq
        %v948 = vshrl.u32 %v947, 7
        %v949 = vsub.s32 %v946, %v948
        %v950 = vrot.slane %v942, %v949
        %v952 = vunpack.c.l.s4 1966171168
        %v953 = vunpack.c.0.s8 %v952
        %v954 = vlaneseq
        %v955 = vshrl.u32 %v954, 7
        %v956 = vsub.s32 %v953, %v955
        %v957 = vrot.slane %v943, %v956
        %v958 = vcombine.high %v950, %v950
        %v959 = vcombine.high %v957, %v957
        %964 = vst.msk [vmem:[%s135 + $0x3] sm:$0x1] %vm762, %v950
        %965 = vst.msk [vmem:[%s135 + $0xb] sm:$0x1] %vm762, %v957
        %966 = vst.msk [vmem:[%s135 + $0x13] sm:$0x1] %vm762, %v958
        %967 = vst.msk [vmem:[%s135 + $0x1b] sm:$0x1] %vm762, %v959
        %s968 = scalar_lea.vmem [#allocation4], 32
        %v969 = vld [vmem:[%s968] sm:$0xff]
        %970 = vxpose.xlu0.b32.start [1/16] %v969, 128
        %971 = vxpose.xlu0.b32.cont [2/16] 0.0, 128
        %972 = vxpose.xlu0.b32.cont [3/16] 0.0, 128
        %973 = vxpose.xlu0.b32.cont [4/16] 0.0, 128
        %974 = vxpose.xlu0.b32.cont [5/16] 0.0, 128
        %975 = vxpose.xlu0.b32.cont [6/16] 0.0, 128
        %976 = vxpose.xlu0.b32.cont [7/16] 0.0, 128
        %977 = vxpose.xlu0.b32.cont [8/16] 0.0, 128
        %978 = vxpose.xlu0.b32.cont [9/16] 0.0, 128
        %979 = vxpose.xlu0.b32.cont [10/16] 0.0, 128
        %980 = vxpose.xlu0.b32.cont [11/16] 0.0, 128
        %981 = vxpose.xlu0.b32.cont [12/16] 0.0, 128
        %982 = vxpose.xlu0.b32.cont [13/16] 0.0, 128
        %983 = vxpose.xlu0.b32.cont [14/16] 0.0, 128
        %984 = vxpose.xlu0.b32.cont [15/16] 0.0, 128
        %985 = vxpose.xlu0.b32.end [16/16] 0.0, 128
        %v986 = vpop.trf.xlu0
        %v987 = vpop.trf.xlu0
        %v988 = vpop.trf.xlu0
        %v989 = vpop.trf.xlu0
        %v990 = vpop.trf.xlu0
        %v991 = vpop.trf.xlu0
        %v992 = vpop.trf.xlu0
        %v993 = vpop.trf.xlu0
        %v994 = vpop.trf.xlu0
        %v995 = vpop.trf.xlu0
        %v996 = vpop.trf.xlu0
        %v997 = vpop.trf.xlu0
        %v998 = vpop.trf.xlu0
        %v999 = vpop.trf.xlu0
        %v1000 = vpop.trf.xlu0
        %v1001 = vpop.trf.xlu0
        %v1004 = vunpack.c.l.s4 1966171168
        %v1005 = vunpack.c.0.s8 %v1004
        %v1006 = vlaneseq
        %v1007 = vshrl.u32 %v1006, 7
        %v1008 = vsub.s32 %v1005, %v1007
        %v1009 = vrot.slane %v986, %v1008
        %v1010 = vcombine.high %v1009, %v1009
        %v1012 = vunpack.c.l.s4 1966171168
        %v1013 = vunpack.c.0.s8 %v1012
        %v1014 = vlaneseq
        %v1015 = vshrl.u32 %v1014, 7
        %v1016 = vsub.s32 %v1013, %v1015
        %v1017 = vrot.slane %v1009, %v1016
        %v1019 = vunpack.c.l.s4 1966171168
        %v1020 = vunpack.c.0.s8 %v1019
        %v1021 = vlaneseq
        %v1022 = vshrl.u32 %v1021, 7
        %v1023 = vsub.s32 %v1020, %v1022
        %v1024 = vrot.slane %v1010, %v1023
        %v1025 = vcombine.high %v1017, %v1017
        %v1026 = vcombine.high %v1024, %v1024
        %1031 = vst.msk [vmem:[%s135 + $0x4] sm:$0x1] %vm762, %v1017
        %1032 = vst.msk [vmem:[%s135 + $0xc] sm:$0x1] %vm762, %v1024
        %1033 = vst.msk [vmem:[%s135 + $0x14] sm:$0x1] %vm762, %v1025
        %1034 = vst.msk [vmem:[%s135 + $0x1c] sm:$0x1] %vm762, %v1026
        %s1035 = scalar_lea.vmem [#allocation4], 40
        %v1036 = vld [vmem:[%s1035] sm:$0xff]
        %1037 = vxpose.xlu0.b32.start [1/16] %v1036, 128
        %1038 = vxpose.xlu0.b32.cont [2/16] 0.0, 128
        %1039 = vxpose.xlu0.b32.cont [3/16] 0.0, 128
        %1040 = vxpose.xlu0.b32.cont [4/16] 0.0, 128
        %1041 = vxpose.xlu0.b32.cont [5/16] 0.0, 128
        %1042 = vxpose.xlu0.b32.cont [6/16] 0.0, 128
        %1043 = vxpose.xlu0.b32.cont [7/16] 0.0, 128
        %1044 = vxpose.xlu0.b32.cont [8/16] 0.0, 128
        %1045 = vxpose.xlu0.b32.cont [9/16] 0.0, 128
        %1046 = vxpose.xlu0.b32.cont [10/16] 0.0, 128
        %1047 = vxpose.xlu0.b32.cont [11/16] 0.0, 128
        %1048 = vxpose.xlu0.b32.cont [12/16] 0.0, 128
        %1049 = vxpose.xlu0.b32.cont [13/16] 0.0, 128
        %1050 = vxpose.xlu0.b32.cont [14/16] 0.0, 128
        %1051 = vxpose.xlu0.b32.cont [15/16] 0.0, 128
        %1052 = vxpose.xlu0.b32.end [16/16] 0.0, 128
        %v1053 = vpop.trf.xlu0
        %v1054 = vpop.trf.xlu0
        %v1055 = vpop.trf.xlu0
        %v1056 = vpop.trf.xlu0
        %v1057 = vpop.trf.xlu0
        %v1058 = vpop.trf.xlu0
        %v1059 = vpop.trf.xlu0
        %v1060 = vpop.trf.xlu0
        %v1061 = vpop.trf.xlu0
        %v1062 = vpop.trf.xlu0
        %v1063 = vpop.trf.xlu0
        %v1064 = vpop.trf.xlu0
        %v1065 = vpop.trf.xlu0
        %v1066 = vpop.trf.xlu0
        %v1067 = vpop.trf.xlu0
        %v1068 = vpop.trf.xlu0
        %v1071 = vunpack.c.l.s4 1966171168
        %v1072 = vunpack.c.0.s8 %v1071
        %v1073 = vlaneseq
        %v1074 = vshrl.u32 %v1073, 7
        %v1075 = vsub.s32 %v1072, %v1074
        %v1076 = vrot.slane %v1053, %v1075
        %v1077 = vcombine.high %v1076, %v1076
        %v1079 = vunpack.c.l.s4 1966171168
        %v1080 = vunpack.c.0.s8 %v1079
        %v1081 = vlaneseq
        %v1082 = vshrl.u32 %v1081, 7
        %v1083 = vsub.s32 %v1080, %v1082
        %v1084 = vrot.slane %v1076, %v1083
        %v1086 = vunpack.c.l.s4 1966171168
        %v1087 = vunpack.c.0.s8 %v1086
        %v1088 = vlaneseq
        %v1089 = vshrl.u32 %v1088, 7
        %v1090 = vsub.s32 %v1087, %v1089
        %v1091 = vrot.slane %v1077, %v1090
        %v1092 = vcombine.high %v1084, %v1084
        %v1093 = vcombine.high %v1091, %v1091
        %1098 = vst.msk [vmem:[%s135 + $0x5] sm:$0x1] %vm762, %v1084
        %1099 = vst.msk [vmem:[%s135 + $0xd] sm:$0x1] %vm762, %v1091
        %1100 = vst.msk [vmem:[%s135 + $0x15] sm:$0x1] %vm762, %v1092
        %1101 = vst.msk [vmem:[%s135 + $0x1d] sm:$0x1] %vm762, %v1093
        %s1102 = scalar_lea.vmem [#allocation4], 48
        %v1103 = vld [vmem:[%s1102] sm:$0xff]
        %1104 = vxpose.xlu0.b32.start [1/16] %v1103, 128
        %1105 = vxpose.xlu0.b32.cont [2/16] 0.0, 128
        %1106 = vxpose.xlu0.b32.cont [3/16] 0.0, 128
        %1107 = vxpose.xlu0.b32.cont [4/16] 0.0, 128
        %1108 = vxpose.xlu0.b32.cont [5/16] 0.0, 128
        %1109 = vxpose.xlu0.b32.cont [6/16] 0.0, 128
        %1110 = vxpose.xlu0.b32.cont [7/16] 0.0, 128
        %1111 = vxpose.xlu0.b32.cont [8/16] 0.0, 128
        %1112 = vxpose.xlu0.b32.cont [9/16] 0.0, 128
        %1113 = vxpose.xlu0.b32.cont [10/16] 0.0, 128
        %1114 = vxpose.xlu0.b32.cont [11/16] 0.0, 128
        %1115 = vxpose.xlu0.b32.cont [12/16] 0.0, 128
        %1116 = vxpose.xlu0.b32.cont [13/16] 0.0, 128
        %1117 = vxpose.xlu0.b32.cont [14/16] 0.0, 128
        %1118 = vxpose.xlu0.b32.cont [15/16] 0.0, 128
        %1119 = vxpose.xlu0.b32.end [16/16] 0.0, 128
        %v1120 = vpop.trf.xlu0
        %v1121 = vpop.trf.xlu0
        %v1122 = vpop.trf.xlu0
        %v1123 = vpop.trf.xlu0
        %v1124 = vpop.trf.xlu0
        %v1125 = vpop.trf.xlu0
        %v1126 = vpop.trf.xlu0
        %v1127 = vpop.trf.xlu0
        %v1128 = vpop.trf.xlu0
        %v1129 = vpop.trf.xlu0
        %v1130 = vpop.trf.xlu0
        %v1131 = vpop.trf.xlu0
        %v1132 = vpop.trf.xlu0
        %v1133 = vpop.trf.xlu0
        %v1134 = vpop.trf.xlu0
        %v1135 = vpop.trf.xlu0
        %v1138 = vunpack.c.l.s4 1966171168
        %v1139 = vunpack.c.0.s8 %v1138
        %v1140 = vlaneseq
        %v1141 = vshrl.u32 %v1140, 7
        %v1142 = vsub.s32 %v1139, %v1141
        %v1143 = vrot.slane %v1120, %v1142
        %v1144 = vcombine.high %v1143, %v1143
        %v1146 = vunpack.c.l.s4 1966171168
        %v1147 = vunpack.c.0.s8 %v1146
        %v1148 = vlaneseq
        %v1149 = vshrl.u32 %v1148, 7
        %v1150 = vsub.s32 %v1147, %v1149
        %v1151 = vrot.slane %v1143, %v1150
        %v1153 = vunpack.c.l.s4 1966171168
        %v1154 = vunpack.c.0.s8 %v1153
        %v1155 = vlaneseq
        %v1156 = vshrl.u32 %v1155, 7
        %v1157 = vsub.s32 %v1154, %v1156
        %v1158 = vrot.slane %v1144, %v1157
        %v1159 = vcombine.high %v1151, %v1151
        %v1160 = vcombine.high %v1158, %v1158
        %1165 = vst.msk [vmem:[%s135 + $0x6] sm:$0x1] %vm762, %v1151
        %1166 = vst.msk [vmem:[%s135 + $0xe] sm:$0x1] %vm762, %v1158
        %1167 = vst.msk [vmem:[%s135 + $0x16] sm:$0x1] %vm762, %v1159
        %1168 = vst.msk [vmem:[%s135 + $0x1e] sm:$0x1] %vm762, %v1160
        %s1169 = scalar_lea.vmem [#allocation4], 56
        %v1170 = vld [vmem:[%s1169] sm:$0xff]
        %1171 = vxpose.xlu0.b32.start [1/16] %v1170, 128
        %1172 = vxpose.xlu0.b32.cont [2/16] 0.0, 128
        %1173 = vxpose.xlu0.b32.cont [3/16] 0.0, 128
        %1174 = vxpose.xlu0.b32.cont [4/16] 0.0, 128
        %1175 = vxpose.xlu0.b32.cont [5/16] 0.0, 128
        %1176 = vxpose.xlu0.b32.cont [6/16] 0.0, 128
        %1177 = vxpose.xlu0.b32.cont [7/16] 0.0, 128
        %1178 = vxpose.xlu0.b32.cont [8/16] 0.0, 128
        %1179 = vxpose.xlu0.b32.cont [9/16] 0.0, 128
        %1180 = vxpose.xlu0.b32.cont [10/16] 0.0, 128
        %1181 = vxpose.xlu0.b32.cont [11/16] 0.0, 128
        %1182 = vxpose.xlu0.b32.cont [12/16] 0.0, 128
        %1183 = vxpose.xlu0.b32.cont [13/16] 0.0, 128
        %1184 = vxpose.xlu0.b32.cont [14/16] 0.0, 128
        %1185 = vxpose.xlu0.b32.cont [15/16] 0.0, 128
        %1186 = vxpose.xlu0.b32.end [16/16] 0.0, 128
        %v1187 = vpop.trf.xlu0
        %v1188 = vpop.trf.xlu0
        %v1189 = vpop.trf.xlu0
        %v1190 = vpop.trf.xlu0
        %v1191 = vpop.trf.xlu0
        %v1192 = vpop.trf.xlu0
        %v1193 = vpop.trf.xlu0
        %v1194 = vpop.trf.xlu0
        %v1195 = vpop.trf.xlu0
        %v1196 = vpop.trf.xlu0
        %v1197 = vpop.trf.xlu0
        %v1198 = vpop.trf.xlu0
        %v1199 = vpop.trf.xlu0
        %v1200 = vpop.trf.xlu0
        %v1201 = vpop.trf.xlu0
        %v1202 = vpop.trf.xlu0
        %v1205 = vunpack.c.l.s4 1966171168
        %v1206 = vunpack.c.0.s8 %v1205
        %v1207 = vlaneseq
        %v1208 = vshrl.u32 %v1207, 7
        %v1209 = vsub.s32 %v1206, %v1208
        %v1210 = vrot.slane %v1187, %v1209
        %v1211 = vcombine.high %v1210, %v1210
        %v1213 = vunpack.c.l.s4 1966171168
        %v1214 = vunpack.c.0.s8 %v1213
        %v1215 = vlaneseq
        %v1216 = vshrl.u32 %v1215, 7
        %v1217 = vsub.s32 %v1214, %v1216
        %v1218 = vrot.slane %v1210, %v1217
        %v1220 = vunpack.c.l.s4 1966171168
        %v1221 = vunpack.c.0.s8 %v1220
        %v1222 = vlaneseq
        %v1223 = vshrl.u32 %v1222, 7
        %v1224 = vsub.s32 %v1221, %v1223
        %v1225 = vrot.slane %v1211, %v1224
        %v1226 = vcombine.high %v1218, %v1218
        %v1227 = vcombine.high %v1225, %v1225
        %1232 = vst.msk [vmem:[%s135 + $0x7] sm:$0x1] %vm762, %v1218
        %1233 = vst.msk [vmem:[%s135 + $0xf] sm:$0x1] %vm762, %v1225
        %1234 = vst.msk [vmem:[%s135 + $0x17] sm:$0x1] %vm762, %v1226
        %1235 = vst.msk [vmem:[%s135 + $0x1f] sm:$0x1] %vm762, %v1227
        %s1236 = sand.u32 %s52, 1
        %s1237 = scalar_lea.sflag [#allocation7], %s1236
        %s1238 = sand.u32 %s52, 1
        %s1239 = smul.addr %s1238, 32
        %s1240 = scalar_lea.vmem [#allocation8], %s1239
        // Predicated region
        $region29: #{tpu_custom_call.1} parent=23 // pred_check
          %p1241 = pneg %p62
        $region30: #{tpu_custom_call.1} parent=23 // pred_check_branch
          %1243 = sbr.rel (%p1241) target = $region32
        $region31: #{tpu_custom_call.1} parent=23 // pred_region
          %s1244 = smul.u32 4, %s18
          %s1246 = ssub.s32 512, 512
          %1247 = vsyncadd %s1237, %s1246
          %s1248 = smul.addr %s1244, 128
          %s1249 = scalar_lea.hbm %s1, %s1248
          %s1250 = sshll.u32 %s1240, 4
          %s1251 = int_to_ptr.vmem [resolvable:$true] %s1250
          %1256 = dma.vmem_to_hbm [thread:$0]  %s1251, 512, %s1249, %s1237, 128, 128, 8
        $region32: #{tpu_custom_call.1} parent=23 // pred_fallthru
          _
      $region24: #{tpu_custom_call.1} parent=5 // pred_fallthru
        _
      %p1257 = scmp.le.s32.totalorder 2, %s13
      // Predicated region
      $region33: #{tpu_custom_call.1} parent=5 // pred_check
        %p1258 = pneg %p1257
      $region34: #{tpu_custom_call.1} parent=5 // pred_check_branch
        %1260 = sbr.rel (%p1258) target = $region36
      $region35: #{tpu_custom_call.1} parent=5 // pred_region
        %s1261 = ssub.s32 %s13, 2
        // Predicated region
        $region37: #{tpu_custom_call.1} parent=35 // pred_check
          %p1262 = pneg %p68
        $region38: #{tpu_custom_call.1} parent=35 // pred_check_branch
          %1264 = sbr.rel (%p1262) target = $region40
        $region39: #{tpu_custom_call.1} parent=35 // pred_region
          %s1265 = sand.u32 %s53, 1
          %s1266 = scalar_lea.sflag [#allocation7], %s1265
          %s1267 = sand.u32 %s53, 1
          %s1268 = smul.addr %s1267, 32
          %s1269 = scalar_lea.vmem [#allocation8], %s1268
          %1270 = dma.done %s1266, 512
        $region40: #{tpu_custom_call.1} parent=35 // pred_fallthru
          _
      $region36: #{tpu_custom_call.1} parent=5 // pred_fallthru
        _
    $region6: #{tpu_custom_call.1} parent=1 // loop_footer
      %s17 = sadd.s32 1, %s13
    $region7: #{tpu_custom_call.1} parent=1 // loop_footer_branch
      %12 = sbr.rel target = $region3
    $region8: #{tpu_custom_call.1} parent=1 // loop_exit
      _
    %1271 = vsyncpa [#allocation6], 1
    %s1272 = scalar_lea.sflag [#allocation6], 1
    %1273 = vsyncpa %s1272, 1
    %1274 = vsyncpa [#allocation7], 1
    %s1275 = scalar_lea.sflag [#allocation7], 1
    %1276 = vsyncpa %s1275, 1

</llo_original>
